<compile_context>
chip_gen: v7x
topology: tpu7x:2x2x1
jax: 0.10.0
libtpu: 0.0.40
codegen_flags: <defaults>
</compile_context>

<pallas_src>
import collections
import functools
import math

import jax
import jax.numpy as jnp
import numpy as np
from jax.experimental import pallas as pl
from jax.experimental.pallas import tpu as pltpu


def _round_up(v, m):
    return ((v + m - 1) // m) * m


# ---------------------------------------------------------------------------
# Host-side constant matrices (cached; folded into the per-config jit).
# ---------------------------------------------------------------------------
@functools.lru_cache(maxsize=None)
def _bilinear_matrix(out_size: int, in_size: int) -> np.ndarray:
    """M (out,in), y_out = M @ y_in == nn.UpsamplingBilinear2d (align_corners=True)."""
    m = np.zeros((out_size, in_size), dtype=np.float32)
    for i in range(out_size):
        if out_size == 1 or in_size == 1:
            src = 0.0
        else:
            src = i * (in_size - 1) / (out_size - 1)
        i0 = min(int(math.floor(src)), in_size - 1)
        i1 = min(i0 + 1, in_size - 1)
        frac = src - i0
        m[i, i0] += 1.0 - frac
        m[i, i1] += frac
    return m


@functools.lru_cache(maxsize=None)
def _kron_upsample_matrix_t(S: int, H: int, W: int) -> np.ndarray:
    """U^T (H*W, S*S) such that out_flat = y_flat @ U^T, with U = kron(R, C)."""
    R = _bilinear_matrix(S, H)   # height interpolation
    C = _bilinear_matrix(S, W)   # width interpolation
    return np.ascontiguousarray(np.kron(R, C).T)


# ---------------------------------------------------------------------------
# Generation-aware tuning knobs.
# ---------------------------------------------------------------------------
_ChipCfg = collections.namedtuple("_ChipCfg", "mxu_rows num_tc vmem_limit vmem_budget")


def _chip_config() -> _ChipCfg:
    kind = ""
    try:
        kind = jax.devices()[0].device_kind.lower()
    except Exception:
        pass
    if "v5e" in kind or "v5 lite" in kind or "v5lite" in kind:
        return _ChipCfg(128, 1, 96 << 20, 80 << 20)   # 128x128 MXU, 128 MiB VMEM
    if "v5p" in kind or "v4" in kind:
        return _ChipCfg(128, 1, 96 << 20, 80 << 20)
    if "v6" in kind:
        return _ChipCfg(256, 1, 96 << 20, 80 << 20)   # 256x256 MXU, 128 MiB VMEM
    if "v7" in kind or "7x" in kind:
        return _ChipCfg(256, 2, 48 << 20, 40 << 20)   # 2 TensorCores, 64 MiB VMEM/TC
    # Unknown generation: conservative limits that are safe everywhere.
    return _ChipCfg(256, 1, 32 << 20, 26 << 20)


def _vmem_bytes(nb, C, HW, SS, x_isz, mxu_isz, out_isz):
    """Rough per-step VMEM footprint (tiling-padded), used to bound nb."""
    c_t, hw_t, ss_t = _round_up(C, 8), _round_up(HW, 128), _round_up(SS, 128)
    x_blk = 2 * nb * c_t * hw_t * x_isz                       # streamed, double-buffered
    ut_blk = _round_up(HW, 8) * ss_t * mxu_isz                # resident, Buffered(1)
    wb_blk = (c_t + _round_up(3 * nb, 8)) * 128 * 4           # tiny residents
    o_blk = 2 * 3 * nb * ss_t * out_isz                       # double-buffered output
    tmp = (2 * nb * c_t * hw_t * 4                            # f32 conv temporaries
           + 3 * nb * hw_t * (4 + mxu_isz)                    # y (f32 + mxu dtype)
           + 3 * nb * ss_t * 4)                               # f32 matmul result
    return x_blk + ut_blk + wb_blk + o_blk + tmp


def _pick_block_batch(n, cfg, vmem_of_nb, budget):
    """Largest nb (multiple of 8) fitting the budget, targeting 3*nb ~ MXU rows."""
    n8 = _round_up(n, 8)
    target = max(8, _round_up(max(1, cfg.mxu_rows // 3), 8))
    hi = min(target, n8)
    if cfg.num_tc >= 2 and n8 >= 16:
        # v7x only: keep >= 2 grid steps so both TensorCores get work.
        hi = min(hi, max(8, _round_up(-(-n8 // 2), 8)))
    hi = max(8, (hi // 8) * 8)
    for nb in range(hi, 7, -8):
        if vmem_of_nb(nb) <= budget:
            return nb
    return 8


# ---------------------------------------------------------------------------
# Per-configuration builder (cached) -> one jitted forward per shape/config.
# ---------------------------------------------------------------------------
@functools.lru_cache(maxsize=None)
def _build_forward(N, C, H, W, S, gain, nb, x_dt, mxu_dt, out_dt, cfg):
    HW, SS = H * W, S * S
    Np = _round_up(N, nb)
    grid = Np // nb
    w_gain = 1.0 / math.sqrt(C)            # kernel_size = 1
    ut_np = _kron_upsample_matrix_t(S, H, W)

    def kernel(x_ref, w_ref, b_ref, ut_ref, o_ref):
        # x_ref : (nb, C, HW)      streamed activation block
        # w_ref : (C, 3)   f32     pre-scaled 1x1-conv weight (resident)
        # b_ref : (3*nb, 1) f32    pre-scaled bias column, channel-major rows (resident)
        # ut_ref: (HW, SS)         kron bilinear-upsample matrix^T (resident)
        # o_ref : (3, nb, SS)      output block, channel-major
        x = x_ref[...].astype(jnp.float32)
        w = w_ref[...]
        # 1x1 conv on the VPU: broadcast-multiply + sublane-sum over C.  Keeps
        # the MXU exclusively on the upsample matmul (no block-diagonal kron).
        ys = []
        for o in range(3):                                  # static unroll
            w_col = w[:, o:o + 1][None, :, :]               # (1, C, 1)
            ys.append(jnp.sum(x * w_col, axis=1))           # (nb, HW) f32
        y = jnp.concatenate(ys, axis=0) + b_ref[...]        # (3*nb, HW), rows = (o, n)
        # Bilinear upsample: one lane-dense MXU matmul (bf16 operands, f32 acc).
        up = jnp.dot(y.astype(ut_ref.dtype), ut_ref[...],
                     preferred_element_type=jnp.float32)    # (3*nb, SS)
        o_ref[...] = up.reshape(3, nb, SS).astype(o_ref.dtype)

    resident = pl.Buffered(1)   # constant index_map -> single VMEM buffer

    call = pl.pallas_call(
        kernel,
        out_shape=jax.ShapeDtypeStruct((3, Np, SS), out_dt),
        grid_spec=pltpu.PrefetchScalarGridSpec(
            num_scalar_prefetch=0,
            grid=(grid,),
            in_specs=[
                pl.BlockSpec((nb, C, HW), lambda i: (i, 0, 0)),        # x (streamed)
                pl.BlockSpec((C, 3), lambda i: (0, 0),
                             pipeline_mode=resident),                  # conv weight
                pl.BlockSpec((3 * nb, 1), lambda i: (0, 0),
                             pipeline_mode=resident),                  # bias column
                pl.BlockSpec((HW, SS), lambda i: (0, 0),
                             pipeline_mode=resident),                  # U^T
            ],
            out_specs=pl.BlockSpec((3, nb, SS), lambda i: (0, i, 0)),
        ),
        compiler_params=pltpu.CompilerParams(
            dimension_semantics=("parallel",),
            vmem_limit_bytes=cfg.vmem_limit,
        ),
    )

    @jax.jit
    def fwd(x, w, b):
        # Host prep fuses under this jit: cast/pad happen in one pass and only
        # when actually needed (x_dt == x.dtype and Np == N -> no extra pass).
        x3 = x.reshape(N, C, HW).astype(x_dt)
        if Np != N:
            x3 = jnp.pad(x3, ((0, Np - N), (0, 0), (0, 0)))
        w_t = (w.reshape(3, C).astype(jnp.float32) * (w_gain * gain)).T    # (C, 3)
        b_col = jnp.repeat(b.astype(jnp.float32) * gain, nb)[:, None]      # (3*nb, 1)
        ut = jnp.asarray(ut_np, dtype=mxu_dt)
        out3 = call(x3, w_t, b_col, ut)                  # (3, Np, SS) channel-major
        # Epilogue (fused single pass): channel-major -> (N, 3, S, S).
        # TODO(synk): a consumer that accepts the channel-major (3, N, S, S)
        # view directly would skip this transpose pass entirely.
        return out3.reshape(3, Np, S, S).transpose(1, 0, 2, 3)[:N]

    return fwd


def to_rgb_forward(x, w, b, final_resolution, gain=1.0, block_batch=None,
                   mxu_dtype=jnp.bfloat16, x_dtype=None, out_dtype=jnp.float32):
    """toRGBLayer forward.

    x:(N,C_in,H,W), w:(3,C_in,1,1), b:(3,) -> (N,3,S,S).
    mxu_dtype : operand dtype of the upsample matmul (bf16 default, f32 = exact).
    x_dtype   : dtype of the streamed activations (None = keep x.dtype, no extra pass).
    out_dtype : kernel output dtype (bf16 halves output HBM traffic if tolerated).
    """
    N, C, H, W = x.shape
    S = int(final_resolution)
    HW, SS = H * W, S * S

    cfg = _chip_config()
    x_dt = np.dtype(x.dtype) if x_dtype is None else np.dtype(x_dtype)
    mxu_dt = np.dtype(mxu_dtype)
    out_dt = np.dtype(out_dtype)

    vmem_of_nb = functools.partial(
        _vmem_bytes, C=C, HW=HW, SS=SS,
        x_isz=x_dt.itemsize, mxu_isz=mxu_dt.itemsize, out_isz=out_dt.itemsize)

    if block_batch is None:
        nb = _pick_block_batch(N, cfg, vmem_of_nb, cfg.vmem_budget)
    else:
        nb = max(8, _round_up(int(block_batch), 8))
    if vmem_of_nb(nb) > cfg.vmem_budget:
        # TODO(synk): separable (width-then-height) bilinear path for shapes where
        # the dense kron matrix (H*W x S*S) no longer fits in VMEM (needed on v7x
        # for large StyleGAN final_resolutions).
        raise NotImplementedError(
            "toRGB kron-upsample blocks do not fit in VMEM for this shape")

    # TODO(synk): for H*W < 128 the spatial lanes are under-utilized; two samples'
    # maps could be packed into one 128-lane row group.
    fwd = _build_forward(N, C, H, W, S, float(gain), nb, x_dt, mxu_dt, out_dt, cfg)
    return fwd(x, w, b)


def _reference(x, w, b, final_resolution, gain=1.0):
    """Pure-JAX reference with identical semantics (independent separable path)."""
    N, C, H, W = x.shape
    S = int(final_resolution)
    w2 = w.reshape(3, C) * (1.0 / math.sqrt(C))
    y = (jnp.einsum('oc,nchw->nohw', w2, x) + b.reshape(1, 3, 1, 1)) * gain
    R = jnp.asarray(_bilinear_matrix(S, H))
    Cm = jnp.asarray(_bilinear_matrix(S, W))
    return jnp.einsum('sh,nohw,tw->nost', R, y, Cm)


if __name__ == "__main__":
    key = jax.random.PRNGKey(0)
    k1, k2, k3, k4 = jax.random.split(key, 4)

    # Primary case: 16 samples, 16 channels, 16x16 -> 32x32.
    N, C_in, H, W, S = 16, 16, 16, 16, 32
    x = jax.random.normal(k1, (N, C_in, H, W), dtype=jnp.float32)
    w = jax.random.normal(k2, (3, C_in, 1, 1), dtype=jnp.float32)   # Conv2DLayer init
    b = jnp.zeros((3,), dtype=jnp.float32)                          # bias_init = 0
    ref = _reference(x, w, b, S)

    # Default path: bf16 MXU operands, f32 accumulation and f32 output.
    out = jax.block_until_ready(to_rgb_forward(x, w, b, S))
    assert out.shape == (N, 3, S, S)
    err = float(jnp.max(jnp.abs(out - ref)))
    assert err < 1e-1, err

    # Exact path: f32 MXU operands.
    out_f32 = jax.block_until_ready(to_rgb_forward(x, w, b, S, mxu_dtype=jnp.float32))
    assert jnp.allclose(out_f32, ref, atol=1e-4, rtol=1e-4), \
        float(jnp.max(jnp.abs(out_f32 - ref)))

    # Multi-block grid (block_batch override -> 2 grid steps), exact path.
    out_mb = jax.block_until_ready(
        to_rgb_forward(x, w, b, S, block_batch=8, mxu_dtype=jnp.float32))
    assert jnp.allclose(out_mb, ref, atol=1e-4, rtol=1e-4), \
        float(jnp.max(jnp.abs(out_mb - ref)))

    # Small case: C not a multiple of 8, H*W < 128 lanes, nonzero bias, batch padding.
    N2, C2, H2, W2, S2 = 2, 4, 8, 8, 16
    x_s = jax.random.normal(k3, (N2, C2, H2, W2), dtype=jnp.float32)
    w_s = jax.random.normal(k4, (3, C2, 1, 1), dtype=jnp.float32)
    b_s = jnp.asarray([0.1, -0.2, 0.3], dtype=jnp.float32)
    out_s = jax.block_until_ready(to_rgb_forward(x_s, w_s, b_s, S2, mxu_dtype=jnp.float32))
    ref_s = _reference(x_s, w_s, b_s, S2)
    assert out_s.shape == (N2, 3, S2, S2)
    assert jnp.allclose(out_s, ref_s, atol=1e-4, rtol=1e-4), \
        float(jnp.max(jnp.abs(out_s - ref_s)))

    # bf16-output variant (halves output HBM traffic when the consumer tolerates it).
    out_bf = jax.block_until_ready(to_rgb_forward(x, w, b, S, out_dtype=jnp.bfloat16))
    assert out_bf.dtype == jnp.bfloat16
    assert float(jnp.max(jnp.abs(out_bf.astype(jnp.float32) - ref))) < 1.5e-1

    print("KERNEL_OK")
</pallas_src>

<mosaic_0001>
module attributes {stable_mosaic.version = 11 : i64} {
  func.func @kernel(%arg0: i32, %arg1: memref<16x16x256xf32, #tpu.memory_space<vmem>>, %arg2: memref<16x3xf32, #tpu.memory_space<vmem>>, %arg3: memref<48x1xf32, #tpu.memory_space<vmem>>, %arg4: memref<256x1024xbf16, #tpu.memory_space<vmem>>, %arg5: memref<3x16x1024xf32, #tpu.memory_space<vmem>>) attributes {dimension_semantics = [#tpu.dimension_semantics<parallel>], iteration_bounds = array<i64: 1>, scalar_prefetch = 0 : i64, scratch_operands = 0 : i64, tpu.core_type = #tpu.core_type<tc>, window_params = [{transform_indices = @transform_0, window_bounds = array<i64: 16, 16, 256>}, {pipeline_mode = #tpu.pipeline_mode<synchronous>, transform_indices = @transform_1, window_bounds = array<i64: 16, 3>}, {pipeline_mode = #tpu.pipeline_mode<synchronous>, transform_indices = @transform_2, window_bounds = array<i64: 48, 1>}, {pipeline_mode = #tpu.pipeline_mode<synchronous>, transform_indices = @transform_3, window_bounds = array<i64: 256, 1024>}, {transform_indices = @transform_4, window_bounds = array<i64: 3, 16, 1024>}]} {
    %c0 = arith.constant 0 : index
    %c0_0 = arith.constant 0 : index
    %c0_1 = arith.constant 0 : index
    %0 = vector.load %arg1[%c0, %c0_0, %c0_1] : memref<16x16x256xf32, #tpu.memory_space<vmem>>, vector<16x16x256xf32>
    %c0_2 = arith.constant 0 : index
    %c0_3 = arith.constant 0 : index
    %1 = vector.load %arg2[%c0_2, %c0_3] : memref<16x3xf32, #tpu.memory_space<vmem>>, vector<16x3xf32>
    %2 = vector.extract_strided_slice %1 {offsets = [0, 0], sizes = [16, 1], strides = [1, 1]} : vector<16x3xf32> to vector<16x1xf32>
    %3 = vector.shape_cast %2 : vector<16x1xf32> to vector<1x16x1xf32>
    %4 = vector.broadcast %3 : vector<1x16x1xf32> to vector<16x16x256xf32>
    %5 = arith.mulf %0, %4 : vector<16x16x256xf32>
    %cst = arith.constant dense<0.000000e+00> : vector<16x256xf32>
    %6 = vector.multi_reduction <add>, %5, %cst [1] : vector<16x16x256xf32> to vector<16x256xf32>
    %7 = vector.extract_strided_slice %1 {offsets = [0, 1], sizes = [16, 1], strides = [1, 1]} : vector<16x3xf32> to vector<16x1xf32>
    %8 = vector.shape_cast %7 : vector<16x1xf32> to vector<1x16x1xf32>
    %9 = vector.broadcast %8 : vector<1x16x1xf32> to vector<16x16x256xf32>
    %10 = arith.mulf %0, %9 : vector<16x16x256xf32>
    %cst_4 = arith.constant dense<0.000000e+00> : vector<16x256xf32>
    %11 = vector.multi_reduction <add>, %10, %cst_4 [1] : vector<16x16x256xf32> to vector<16x256xf32>
    %12 = vector.extract_strided_slice %1 {offsets = [0, 2], sizes = [16, 1], strides = [1, 1]} : vector<16x3xf32> to vector<16x1xf32>
    %13 = vector.shape_cast %12 : vector<16x1xf32> to vector<1x16x1xf32>
    %14 = vector.broadcast %13 : vector<1x16x1xf32> to vector<16x16x256xf32>
    %15 = arith.mulf %0, %14 : vector<16x16x256xf32>
    %cst_5 = arith.constant dense<0.000000e+00> : vector<16x256xf32>
    %16 = vector.multi_reduction <add>, %15, %cst_5 [1] : vector<16x16x256xf32> to vector<16x256xf32>
    %17 = tpu.concatenate %6, %11, %16 in 0 : vector<16x256xf32>, vector<16x256xf32>, vector<16x256xf32> -> vector<48x256xf32>
    %c0_6 = arith.constant 0 : index
    %c0_7 = arith.constant 0 : index
    %18 = vector.load %arg3[%c0_6, %c0_7] : memref<48x1xf32, #tpu.memory_space<vmem>>, vector<48x1xf32>
    %19 = vector.broadcast %18 : vector<48x1xf32> to vector<48x256xf32>
    %20 = arith.addf %17, %19 : vector<48x256xf32>
    %21 = arith.truncf %20 : vector<48x256xf32> to vector<48x256xbf16>
    %c0_8 = arith.constant 0 : index
    %c0_9 = arith.constant 0 : index
    %22 = vector.load %arg4[%c0_8, %c0_9] : memref<256x1024xbf16, #tpu.memory_space<vmem>>, vector<256x1024xbf16>
    %cst_10 = arith.constant dense<0.000000e+00> : vector<48x1024xf32>
    %23 = tpu.matmul %21, %22, %cst_10 {dimension_numbers = #tpu.dot_dimension_numbers<[1], [0], [0], [1], [0, 0, 1, 1], [], []>} : vector<48x256xbf16>, vector<256x1024xbf16>, vector<48x1024xf32> -> vector<48x1024xf32>
    %24 = vector.shape_cast %23 : vector<48x1024xf32> to vector<3x16x1024xf32>
    %c0_11 = arith.constant 0 : index
    %c0_12 = arith.constant 0 : index
    %c0_13 = arith.constant 0 : index
    %25 = vector.load %arg5[%c0_11, %c0_12, %c0_13] : memref<3x16x1024xf32, #tpu.memory_space<vmem>>, vector<3x16x1024xf32>
    tpu.vector_store %arg5[%c0_11, %c0_12, %c0_13], %24 {strides = array<i32>} : memref<3x16x1024xf32, #tpu.memory_space<vmem>>, vector<3x16x1024xf32>,
    return
  }
  func.func @transform_0(%arg0: i32) -> (i32, i32, i32) {
    %c0_i32 = arith.constant 0 : i32
    %c0_i32_0 = arith.constant 0 : i32
    %c0_i32_1 = arith.constant 0 : i32
    return %arg0, %c0_i32, %c0_i32_0 : i32, i32, i32
  }
  func.func @transform_1(%arg0: i32) -> (i32, i32) {
    %c0_i32 = arith.constant 0 : i32
    %c0_i32_0 = arith.constant 0 : i32
    %c0_i32_1 = arith.constant 0 : i32
    return %c0_i32, %c0_i32_0 : i32, i32
  }
  func.func @transform_2(%arg0: i32) -> (i32, i32) {
    %c0_i32 = arith.constant 0 : i32
    %c0_i32_0 = arith.constant 0 : i32
    %c0_i32_1 = arith.constant 0 : i32
    return %c0_i32, %c0_i32_0 : i32, i32
  }
  func.func @transform_3(%arg0: i32) -> (i32, i32) {
    %c0_i32 = arith.constant 0 : i32
    %c0_i32_0 = arith.constant 0 : i32
    %c0_i32_1 = arith.constant 0 : i32
    return %c0_i32, %c0_i32_0 : i32, i32
  }
  func.func @transform_4(%arg0: i32) -> (i32, i32, i32) {
    %c0_i32 = arith.constant 0 : i32
    %c0_i32_0 = arith.constant 0 : i32
    %c0_i32_1 = arith.constant 0 : i32
    return %c0_i32, %arg0, %c0_i32_0 : i32, i32, i32
  }
}

</mosaic_0001>

<llo_original>
// kernel: fwd.1
$region0: #{fwd.1}
  #allocation0 [shape = 'u32[]', space=smem, size = 0x4, offset = 0x4, fixed_abs, tag = 'smem constant byte address 0x4 - core index']
  #allocation1 [shape = 'u32[144,128]{1,0:T(1,128)}', space=vmem, size = 0x12000, scoped, tag = 'internal scratch']
  %s0 = inlined_call_operand.vmem [shape: f32[16,16,256], index: 0, kind: input, shape index: {}]
  %s1 = inlined_call_operand.vmem [shape: f32[16,3], index: 1, kind: input, shape index: {}]
  %s2 = inlined_call_operand.vmem [shape: f32[48,1], index: 2, kind: input, shape index: {}]
  %s3 = inlined_call_operand.vmem [shape: bf16[256,1024], index: 3, kind: input, shape index: {}]
  %s4 = inlined_call_operand.vmem [shape: f32[3,16,1024], index: 4, kind: output, shape index: {}]
  %s5 = sld [smem:[#allocation0]]
  $region26: #{fwd.1} parent=0
    _
  %s7 = ssub.s32 1, %s5
  %s8 = scalar_select 0, %s7, %s5
  // Predicated region
  $region2: #{fwd.1} parent=0 // pred_check
    _
  $region3: #{fwd.1} parent=0 // pred_check_branch
    %10 = sbr.rel (0) target = $region5
  $region4: #{fwd.1} parent=0 // pred_region
    _
  $region5: #{fwd.1} parent=0 // pred_fallthru
    _
  // Predicated region
  $region6: #{fwd.1} parent=0 // pred_check
    _
  $region7: #{fwd.1} parent=0 // pred_check_branch
    %12 = sbr.rel (0) target = $region9
  $region8: #{fwd.1} parent=0 // pred_region
    _
  $region9: #{fwd.1} parent=0 // pred_fallthru
    _
  // Predicated region
  $region10: #{fwd.1} parent=0 // pred_check
    _
  $region11: #{fwd.1} parent=0 // pred_check_branch
    %14 = sbr.rel (0) target = $region13
  $region12: #{fwd.1} parent=0 // pred_region
    _
  $region13: #{fwd.1} parent=0 // pred_fallthru
    _
  // Predicated region
  $region14: #{fwd.1} parent=0 // pred_check
    _
  $region15: #{fwd.1} parent=0 // pred_check_branch
    %16 = sbr.rel (0) target = $region17
  $region16: #{fwd.1} parent=0 // pred_region
    _
  $region17: #{fwd.1} parent=0 // pred_fallthru
    _
  %v17 = vld [vmem:[%s0] sm:$0xff]
  %v18 = vld [vmem:[%s0 + $0x8] sm:$0xff]
  %v19 = vld [vmem:[%s0 + $0x10] sm:$0xff]
  %v20 = vld [vmem:[%s0 + $0x18] sm:$0xff]
  %v21 = vld [vmem:[%s0 + $0x20] sm:$0xff]
  %v22 = vld [vmem:[%s0 + $0x28] sm:$0xff]
  %v23 = vld [vmem:[%s0 + $0x30] sm:$0xff]
  %v24 = vld [vmem:[%s0 + $0x38] sm:$0xff]
  %v25 = vld [vmem:[%s0 + $0x40] sm:$0xff]
  %v26 = vld [vmem:[%s0 + $0x48] sm:$0xff]
  %v27 = vld [vmem:[%s0 + $0x50] sm:$0xff]
  %v28 = vld [vmem:[%s0 + $0x58] sm:$0xff]
  %v29 = vld [vmem:[%s0 + $0x60] sm:$0xff]
  %v30 = vld [vmem:[%s0 + $0x68] sm:$0xff]
  %v31 = vld [vmem:[%s0 + $0x70] sm:$0xff]
  %v32 = vld [vmem:[%s0 + $0x78] sm:$0xff]
  %v33 = vld [vmem:[%s0 + $0x80] sm:$0xff]
  %v34 = vld [vmem:[%s0 + $0x88] sm:$0xff]
  %v35 = vld [vmem:[%s0 + $0x90] sm:$0xff]
  %v36 = vld [vmem:[%s0 + $0x98] sm:$0xff]
  %v37 = vld [vmem:[%s0 + $0xa0] sm:$0xff]
  %v38 = vld [vmem:[%s0 + $0xa8] sm:$0xff]
  %v39 = vld [vmem:[%s0 + $0xb0] sm:$0xff]
  %v40 = vld [vmem:[%s0 + $0xb8] sm:$0xff]
  %v41 = vld [vmem:[%s0 + $0xc0] sm:$0xff]
  %v42 = vld [vmem:[%s0 + $0xc8] sm:$0xff]
  %v43 = vld [vmem:[%s0 + $0xd0] sm:$0xff]
  %v44 = vld [vmem:[%s0 + $0xd8] sm:$0xff]
  %v45 = vld [vmem:[%s0 + $0xe0] sm:$0xff]
  %v46 = vld [vmem:[%s0 + $0xe8] sm:$0xff]
  %v47 = vld [vmem:[%s0 + $0xf0] sm:$0xff]
  %v48 = vld [vmem:[%s0 + $0xf8] sm:$0xff]
  %v49 = vld [vmem:[%s0 + $0x100] sm:$0xff]
  %v50 = vld [vmem:[%s0 + $0x108] sm:$0xff]
  %v51 = vld [vmem:[%s0 + $0x110] sm:$0xff]
  %v52 = vld [vmem:[%s0 + $0x118] sm:$0xff]
  %v53 = vld [vmem:[%s0 + $0x120] sm:$0xff]
  %v54 = vld [vmem:[%s0 + $0x128] sm:$0xff]
  %v55 = vld [vmem:[%s0 + $0x130] sm:$0xff]
  %v56 = vld [vmem:[%s0 + $0x138] sm:$0xff]
  %v57 = vld [vmem:[%s0 + $0x140] sm:$0xff]
  %v58 = vld [vmem:[%s0 + $0x148] sm:$0xff]
  %v59 = vld [vmem:[%s0 + $0x150] sm:$0xff]
  %v60 = vld [vmem:[%s0 + $0x158] sm:$0xff]
  %v61 = vld [vmem:[%s0 + $0x160] sm:$0xff]
  %v62 = vld [vmem:[%s0 + $0x168] sm:$0xff]
  %v63 = vld [vmem:[%s0 + $0x170] sm:$0xff]
  %v64 = vld [vmem:[%s0 + $0x178] sm:$0xff]
  %v65 = vld [vmem:[%s0 + $0x180] sm:$0xff]
  %v66 = vld [vmem:[%s0 + $0x188] sm:$0xff]
  %v67 = vld [vmem:[%s0 + $0x190] sm:$0xff]
  %v68 = vld [vmem:[%s0 + $0x198] sm:$0xff]
  %v69 = vld [vmem:[%s0 + $0x1a0] sm:$0xff]
  %v70 = vld [vmem:[%s0 + $0x1a8] sm:$0xff]
  %v71 = vld [vmem:[%s0 + $0x1b0] sm:$0xff]
  %v72 = vld [vmem:[%s0 + $0x1b8] sm:$0xff]
  %v73 = vld [vmem:[%s0 + $0x1c0] sm:$0xff]
  %v74 = vld [vmem:[%s0 + $0x1c8] sm:$0xff]
  %v75 = vld [vmem:[%s0 + $0x1d0] sm:$0xff]
  %v76 = vld [vmem:[%s0 + $0x1d8] sm:$0xff]
  %v77 = vld [vmem:[%s0 + $0x1e0] sm:$0xff]
  %v78 = vld [vmem:[%s0 + $0x1e8] sm:$0xff]
  %v79 = vld [vmem:[%s0 + $0x1f0] sm:$0xff]
  %v80 = vld [vmem:[%s0 + $0x1f8] sm:$0xff]
  %v81 = vld [vmem:[%s1] sm:$0xff]
  %v82 = vld [vmem:[%s1 + $0x8] sm:$0xff]
  %84 = vset.pattern.permute.xlu0 0
  %85 = vperm.xlu0 %84, %v81
  %v86 = vpop.permute.xlu0 %85
  %89 = vset.pattern.permute.xlu0 0
  %90 = vperm.xlu0 %89, %v82
  %v91 = vpop.permute.xlu0 %90
  %v93 = vmul.f32 %v17, %v86
  %v94 = vmul.f32 %v18, %v86
  %v95 = vmul.f32 %v19, %v91
  %v96 = vmul.f32 %v20, %v91
  %v97 = vmul.f32 %v21, %v86
  %v98 = vmul.f32 %v22, %v86
  %v99 = vmul.f32 %v23, %v91
  %v100 = vmul.f32 %v24, %v91
  %v101 = vmul.f32 %v25, %v86
  %v102 = vmul.f32 %v26, %v86
  %v103 = vmul.f32 %v27, %v91
  %v104 = vmul.f32 %v28, %v91
  %v105 = vmul.f32 %v29, %v86
  %v106 = vmul.f32 %v30, %v86
  %v107 = vmul.f32 %v31, %v91
  %v108 = vmul.f32 %v32, %v91
  %v109 = vmul.f32 %v33, %v86
  %v110 = vmul.f32 %v34, %v86
  %v111 = vmul.f32 %v35, %v91
  %v112 = vmul.f32 %v36, %v91
  %v113 = vmul.f32 %v37, %v86
  %v114 = vmul.f32 %v38, %v86
  %v115 = vmul.f32 %v39, %v91
  %v116 = vmul.f32 %v40, %v91
  %v117 = vmul.f32 %v41, %v86
  %v118 = vmul.f32 %v42, %v86
  %v119 = vmul.f32 %v43, %v91
  %v120 = vmul.f32 %v44, %v91
  %v121 = vmul.f32 %v45, %v86
  %v122 = vmul.f32 %v46, %v86
  %v123 = vmul.f32 %v47, %v91
  %v124 = vmul.f32 %v48, %v91
  %v125 = vmul.f32 %v49, %v86
  %v126 = vmul.f32 %v50, %v86
  %v127 = vmul.f32 %v51, %v91
  %v128 = vmul.f32 %v52, %v91
  %v129 = vmul.f32 %v53, %v86
  %v130 = vmul.f32 %v54, %v86
  %v131 = vmul.f32 %v55, %v91
  %v132 = vmul.f32 %v56, %v91
  %v133 = vmul.f32 %v57, %v86
  %v134 = vmul.f32 %v58, %v86
  %v135 = vmul.f32 %v59, %v91
  %v136 = vmul.f32 %v60, %v91
  %v137 = vmul.f32 %v61, %v86
  %v138 = vmul.f32 %v62, %v86
  %v139 = vmul.f32 %v63, %v91
  %v140 = vmul.f32 %v64, %v91
  %v141 = vmul.f32 %v65, %v86
  %v142 = vmul.f32 %v66, %v86
  %v143 = vmul.f32 %v67, %v91
  %v144 = vmul.f32 %v68, %v91
  %v145 = vmul.f32 %v69, %v86
  %v146 = vmul.f32 %v70, %v86
  %v147 = vmul.f32 %v71, %v91
  %v148 = vmul.f32 %v72, %v91
  %v149 = vmul.f32 %v73, %v86
  %v150 = vmul.f32 %v74, %v86
  %v151 = vmul.f32 %v75, %v91
  %v152 = vmul.f32 %v76, %v91
  %v153 = vmul.f32 %v77, %v86
  %v154 = vmul.f32 %v78, %v86
  %v155 = vmul.f32 %v79, %v91
  %v156 = vmul.f32 %v80, %v91
  %v157 = vadd.f32 %v93, %v95
  %v158 = vrot.slane %v157, 4
  %v159 = vadd.f32 %v157, %v158
  %v160 = vrot.slane %v159, 2
  %v161 = vadd.f32 %v159, %v160
  %v162 = vrot.slane %v161, 1
  %v163 = vadd.f32 %v161, %v162
  %v164 = vadd.f32 %v94, %v96
  %v165 = vrot.slane %v164, 4
  %v166 = vadd.f32 %v164, %v165
  %v167 = vrot.slane %v166, 2
  %v168 = vadd.f32 %v166, %v167
  %v169 = vrot.slane %v168, 1
  %v170 = vadd.f32 %v168, %v169
  %v171 = vadd.f32 %v97, %v99
  %v172 = vrot.slane %v171, 4
  %v173 = vadd.f32 %v171, %v172
  %v174 = vrot.slane %v173, 2
  %v175 = vadd.f32 %v173, %v174
  %v176 = vrot.slane %v175, 1
  %v177 = vadd.f32 %v175, %v176
  %v178 = vadd.f32 %v98, %v100
  %v179 = vrot.slane %v178, 4
  %v180 = vadd.f32 %v178, %v179
  %v181 = vrot.slane %v180, 2
  %v182 = vadd.f32 %v180, %v181
  %v183 = vrot.slane %v182, 1
  %v184 = vadd.f32 %v182, %v183
  %v185 = vadd.f32 %v101, %v103
  %v186 = vrot.slane %v185, 4
  %v187 = vadd.f32 %v185, %v186
  %v188 = vrot.slane %v187, 2
  %v189 = vadd.f32 %v187, %v188
  %v190 = vrot.slane %v189, 1
  %v191 = vadd.f32 %v189, %v190
  %v192 = vadd.f32 %v102, %v104
  %v193 = vrot.slane %v192, 4
  %v194 = vadd.f32 %v192, %v193
  %v195 = vrot.slane %v194, 2
  %v196 = vadd.f32 %v194, %v195
  %v197 = vrot.slane %v196, 1
  %v198 = vadd.f32 %v196, %v197
  %v199 = vadd.f32 %v105, %v107
  %v200 = vrot.slane %v199, 4
  %v201 = vadd.f32 %v199, %v200
  %v202 = vrot.slane %v201, 2
  %v203 = vadd.f32 %v201, %v202
  %v204 = vrot.slane %v203, 1
  %v205 = vadd.f32 %v203, %v204
  %v206 = vadd.f32 %v106, %v108
  %v207 = vrot.slane %v206, 4
  %v208 = vadd.f32 %v206, %v207
  %v209 = vrot.slane %v208, 2
  %v210 = vadd.f32 %v208, %v209
  %v211 = vrot.slane %v210, 1
  %v212 = vadd.f32 %v210, %v211
  %v213 = vadd.f32 %v109, %v111
  %v214 = vrot.slane %v213, 4
  %v215 = vadd.f32 %v213, %v214
  %v216 = vrot.slane %v215, 2
  %v217 = vadd.f32 %v215, %v216
  %v218 = vrot.slane %v217, 1
  %v219 = vadd.f32 %v217, %v218
  %v220 = vadd.f32 %v110, %v112
  %v221 = vrot.slane %v220, 4
  %v222 = vadd.f32 %v220, %v221
  %v223 = vrot.slane %v222, 2
  %v224 = vadd.f32 %v222, %v223
  %v225 = vrot.slane %v224, 1
  %v226 = vadd.f32 %v224, %v225
  %v227 = vadd.f32 %v113, %v115
  %v228 = vrot.slane %v227, 4
  %v229 = vadd.f32 %v227, %v228
  %v230 = vrot.slane %v229, 2
  %v231 = vadd.f32 %v229, %v230
  %v232 = vrot.slane %v231, 1
  %v233 = vadd.f32 %v231, %v232
  %v234 = vadd.f32 %v114, %v116
  %v235 = vrot.slane %v234, 4
  %v236 = vadd.f32 %v234, %v235
  %v237 = vrot.slane %v236, 2
  %v238 = vadd.f32 %v236, %v237
  %v239 = vrot.slane %v238, 1
  %v240 = vadd.f32 %v238, %v239
  %v241 = vadd.f32 %v117, %v119
  %v242 = vrot.slane %v241, 4
  %v243 = vadd.f32 %v241, %v242
  %v244 = vrot.slane %v243, 2
  %v245 = vadd.f32 %v243, %v244
  %v246 = vrot.slane %v245, 1
  %v247 = vadd.f32 %v245, %v246
  %v248 = vadd.f32 %v118, %v120
  %v249 = vrot.slane %v248, 4
  %v250 = vadd.f32 %v248, %v249
  %v251 = vrot.slane %v250, 2
  %v252 = vadd.f32 %v250, %v251
  %v253 = vrot.slane %v252, 1
  %v254 = vadd.f32 %v252, %v253
  %v255 = vadd.f32 %v121, %v123
  %v256 = vrot.slane %v255, 4
  %v257 = vadd.f32 %v255, %v256
  %v258 = vrot.slane %v257, 2
  %v259 = vadd.f32 %v257, %v258
  %v260 = vrot.slane %v259, 1
  %v261 = vadd.f32 %v259, %v260
  %v262 = vadd.f32 %v122, %v124
  %v263 = vrot.slane %v262, 4
  %v264 = vadd.f32 %v262, %v263
  %v265 = vrot.slane %v264, 2
  %v266 = vadd.f32 %v264, %v265
  %v267 = vrot.slane %v266, 1
  %v268 = vadd.f32 %v266, %v267
  %v269 = vadd.f32 %v125, %v127
  %v270 = vrot.slane %v269, 4
  %v271 = vadd.f32 %v269, %v270
  %v272 = vrot.slane %v271, 2
  %v273 = vadd.f32 %v271, %v272
  %v274 = vrot.slane %v273, 1
  %v275 = vadd.f32 %v273, %v274
  %v276 = vadd.f32 %v126, %v128
  %v277 = vrot.slane %v276, 4
  %v278 = vadd.f32 %v276, %v277
  %v279 = vrot.slane %v278, 2
  %v280 = vadd.f32 %v278, %v279
  %v281 = vrot.slane %v280, 1
  %v282 = vadd.f32 %v280, %v281
  %v283 = vadd.f32 %v129, %v131
  %v284 = vrot.slane %v283, 4
  %v285 = vadd.f32 %v283, %v284
  %v286 = vrot.slane %v285, 2
  %v287 = vadd.f32 %v285, %v286
  %v288 = vrot.slane %v287, 1
  %v289 = vadd.f32 %v287, %v288
  %v290 = vadd.f32 %v130, %v132
  %v291 = vrot.slane %v290, 4
  %v292 = vadd.f32 %v290, %v291
  %v293 = vrot.slane %v292, 2
  %v294 = vadd.f32 %v292, %v293
  %v295 = vrot.slane %v294, 1
  %v296 = vadd.f32 %v294, %v295
  %v297 = vadd.f32 %v133, %v135
  %v298 = vrot.slane %v297, 4
  %v299 = vadd.f32 %v297, %v298
  %v300 = vrot.slane %v299, 2
  %v301 = vadd.f32 %v299, %v300
  %v302 = vrot.slane %v301, 1
  %v303 = vadd.f32 %v301, %v302
  %v304 = vadd.f32 %v134, %v136
  %v305 = vrot.slane %v304, 4
  %v306 = vadd.f32 %v304, %v305
  %v307 = vrot.slane %v306, 2
  %v308 = vadd.f32 %v306, %v307
  %v309 = vrot.slane %v308, 1
  %v310 = vadd.f32 %v308, %v309
  %v311 = vadd.f32 %v137, %v139
  %v312 = vrot.slane %v311, 4
  %v313 = vadd.f32 %v311, %v312
  %v314 = vrot.slane %v313, 2
  %v315 = vadd.f32 %v313, %v314
  %v316 = vrot.slane %v315, 1
  %v317 = vadd.f32 %v315, %v316
  %v318 = vadd.f32 %v138, %v140
  %v319 = vrot.slane %v318, 4
  %v320 = vadd.f32 %v318, %v319
  %v321 = vrot.slane %v320, 2
  %v322 = vadd.f32 %v320, %v321
  %v323 = vrot.slane %v322, 1
  %v324 = vadd.f32 %v322, %v323
  %v325 = vadd.f32 %v141, %v143
  %v326 = vrot.slane %v325, 4
  %v327 = vadd.f32 %v325, %v326
  %v328 = vrot.slane %v327, 2
  %v329 = vadd.f32 %v327, %v328
  %v330 = vrot.slane %v329, 1
  %v331 = vadd.f32 %v329, %v330
  %v332 = vadd.f32 %v142, %v144
  %v333 = vrot.slane %v332, 4
  %v334 = vadd.f32 %v332, %v333
  %v335 = vrot.slane %v334, 2
  %v336 = vadd.f32 %v334, %v335
  %v337 = vrot.slane %v336, 1
  %v338 = vadd.f32 %v336, %v337
  %v339 = vadd.f32 %v145, %v147
  %v340 = vrot.slane %v339, 4
  %v341 = vadd.f32 %v339, %v340
  %v342 = vrot.slane %v341, 2
  %v343 = vadd.f32 %v341, %v342
  %v344 = vrot.slane %v343, 1
  %v345 = vadd.f32 %v343, %v344
  %v346 = vadd.f32 %v146, %v148
  %v347 = vrot.slane %v346, 4
  %v348 = vadd.f32 %v346, %v347
  %v349 = vrot.slane %v348, 2
  %v350 = vadd.f32 %v348, %v349
  %v351 = vrot.slane %v350, 1
  %v352 = vadd.f32 %v350, %v351
  %v353 = vadd.f32 %v149, %v151
  %v354 = vrot.slane %v353, 4
  %v355 = vadd.f32 %v353, %v354
  %v356 = vrot.slane %v355, 2
  %v357 = vadd.f32 %v355, %v356
  %v358 = vrot.slane %v357, 1
  %v359 = vadd.f32 %v357, %v358
  %v360 = vadd.f32 %v150, %v152
  %v361 = vrot.slane %v360, 4
  %v362 = vadd.f32 %v360, %v361
  %v363 = vrot.slane %v362, 2
  %v364 = vadd.f32 %v362, %v363
  %v365 = vrot.slane %v364, 1
  %v366 = vadd.f32 %v364, %v365
  %v367 = vadd.f32 %v153, %v155
  %v368 = vrot.slane %v367, 4
  %v369 = vadd.f32 %v367, %v368
  %v370 = vrot.slane %v369, 2
  %v371 = vadd.f32 %v369, %v370
  %v372 = vrot.slane %v371, 1
  %v373 = vadd.f32 %v371, %v372
  %v374 = vadd.f32 %v154, %v156
  %v375 = vrot.slane %v374, 4
  %v376 = vadd.f32 %v374, %v375
  %v377 = vrot.slane %v376, 2
  %v378 = vadd.f32 %v376, %v377
  %v379 = vrot.slane %v378, 1
  %v380 = vadd.f32 %v378, %v379
  %381 = vset.pattern.permute.xlu0 1
  %382 = vperm.xlu0 %381, %v81
  %v383 = vpop.permute.xlu0 %382
  %385 = vset.pattern.permute.xlu0 1
  %386 = vperm.xlu0 %385, %v82
  %v387 = vpop.permute.xlu0 %386
  %v389 = vmul.f32 %v17, %v383
  %v390 = vmul.f32 %v18, %v383
  %v391 = vmul.f32 %v19, %v387
  %v392 = vmul.f32 %v20, %v387
  %v393 = vmul.f32 %v21, %v383
  %v394 = vmul.f32 %v22, %v383
  %v395 = vmul.f32 %v23, %v387
  %v396 = vmul.f32 %v24, %v387
  %v397 = vmul.f32 %v25, %v383
  %v398 = vmul.f32 %v26, %v383
  %v399 = vmul.f32 %v27, %v387
  %v400 = vmul.f32 %v28, %v387
  %v401 = vmul.f32 %v29, %v383
  %v402 = vmul.f32 %v30, %v383
  %v403 = vmul.f32 %v31, %v387
  %v404 = vmul.f32 %v32, %v387
  %v405 = vmul.f32 %v33, %v383
  %v406 = vmul.f32 %v34, %v383
  %v407 = vmul.f32 %v35, %v387
  %v408 = vmul.f32 %v36, %v387
  %v409 = vmul.f32 %v37, %v383
  %v410 = vmul.f32 %v38, %v383
  %v411 = vmul.f32 %v39, %v387
  %v412 = vmul.f32 %v40, %v387
  %v413 = vmul.f32 %v41, %v383
  %v414 = vmul.f32 %v42, %v383
  %v415 = vmul.f32 %v43, %v387
  %v416 = vmul.f32 %v44, %v387
  %v417 = vmul.f32 %v45, %v383
  %v418 = vmul.f32 %v46, %v383
  %v419 = vmul.f32 %v47, %v387
  %v420 = vmul.f32 %v48, %v387
  %v421 = vmul.f32 %v49, %v383
  %v422 = vmul.f32 %v50, %v383
  %v423 = vmul.f32 %v51, %v387
  %v424 = vmul.f32 %v52, %v387
  %v425 = vmul.f32 %v53, %v383
  %v426 = vmul.f32 %v54, %v383
  %v427 = vmul.f32 %v55, %v387
  %v428 = vmul.f32 %v56, %v387
  %v429 = vmul.f32 %v57, %v383
  %v430 = vmul.f32 %v58, %v383
  %v431 = vmul.f32 %v59, %v387
  %v432 = vmul.f32 %v60, %v387
  %v433 = vmul.f32 %v61, %v383
  %v434 = vmul.f32 %v62, %v383
  %v435 = vmul.f32 %v63, %v387
  %v436 = vmul.f32 %v64, %v387
  %v437 = vmul.f32 %v65, %v383
  %v438 = vmul.f32 %v66, %v383
  %v439 = vmul.f32 %v67, %v387
  %v440 = vmul.f32 %v68, %v387
  %v441 = vmul.f32 %v69, %v383
  %v442 = vmul.f32 %v70, %v383
  %v443 = vmul.f32 %v71, %v387
  %v444 = vmul.f32 %v72, %v387
  %v445 = vmul.f32 %v73, %v383
  %v446 = vmul.f32 %v74, %v383
  %v447 = vmul.f32 %v75, %v387
  %v448 = vmul.f32 %v76, %v387
  %v449 = vmul.f32 %v77, %v383
  %v450 = vmul.f32 %v78, %v383
  %v451 = vmul.f32 %v79, %v387
  %v452 = vmul.f32 %v80, %v387
  %v453 = vadd.f32 %v389, %v391
  %v454 = vrot.slane %v453, 4
  %v455 = vadd.f32 %v453, %v454
  %v456 = vrot.slane %v455, 2
  %v457 = vadd.f32 %v455, %v456
  %v458 = vrot.slane %v457, 1
  %v459 = vadd.f32 %v457, %v458
  %v460 = vadd.f32 %v390, %v392
  %v461 = vrot.slane %v460, 4
  %v462 = vadd.f32 %v460, %v461
  %v463 = vrot.slane %v462, 2
  %v464 = vadd.f32 %v462, %v463
  %v465 = vrot.slane %v464, 1
  %v466 = vadd.f32 %v464, %v465
  %v467 = vadd.f32 %v393, %v395
  %v468 = vrot.slane %v467, 4
  %v469 = vadd.f32 %v467, %v468
  %v470 = vrot.slane %v469, 2
  %v471 = vadd.f32 %v469, %v470
  %v472 = vrot.slane %v471, 1
  %v473 = vadd.f32 %v471, %v472
  %v474 = vadd.f32 %v394, %v396
  %v475 = vrot.slane %v474, 4
  %v476 = vadd.f32 %v474, %v475
  %v477 = vrot.slane %v476, 2
  %v478 = vadd.f32 %v476, %v477
  %v479 = vrot.slane %v478, 1
  %v480 = vadd.f32 %v478, %v479
  %v481 = vadd.f32 %v397, %v399
  %v482 = vrot.slane %v481, 4
  %v483 = vadd.f32 %v481, %v482
  %v484 = vrot.slane %v483, 2
  %v485 = vadd.f32 %v483, %v484
  %v486 = vrot.slane %v485, 1
  %v487 = vadd.f32 %v485, %v486
  %v488 = vadd.f32 %v398, %v400
  %v489 = vrot.slane %v488, 4
  %v490 = vadd.f32 %v488, %v489
  %v491 = vrot.slane %v490, 2
  %v492 = vadd.f32 %v490, %v491
  %v493 = vrot.slane %v492, 1
  %v494 = vadd.f32 %v492, %v493
  %v495 = vadd.f32 %v401, %v403
  %v496 = vrot.slane %v495, 4
  %v497 = vadd.f32 %v495, %v496
  %v498 = vrot.slane %v497, 2
  %v499 = vadd.f32 %v497, %v498
  %v500 = vrot.slane %v499, 1
  %v501 = vadd.f32 %v499, %v500
  %v502 = vadd.f32 %v402, %v404
  %v503 = vrot.slane %v502, 4
  %v504 = vadd.f32 %v502, %v503
  %v505 = vrot.slane %v504, 2
  %v506 = vadd.f32 %v504, %v505
  %v507 = vrot.slane %v506, 1
  %v508 = vadd.f32 %v506, %v507
  %v509 = vadd.f32 %v405, %v407
  %v510 = vrot.slane %v509, 4
  %v511 = vadd.f32 %v509, %v510
  %v512 = vrot.slane %v511, 2
  %v513 = vadd.f32 %v511, %v512
  %v514 = vrot.slane %v513, 1
  %v515 = vadd.f32 %v513, %v514
  %v516 = vadd.f32 %v406, %v408
  %v517 = vrot.slane %v516, 4
  %v518 = vadd.f32 %v516, %v517
  %v519 = vrot.slane %v518, 2
  %v520 = vadd.f32 %v518, %v519
  %v521 = vrot.slane %v520, 1
  %v522 = vadd.f32 %v520, %v521
  %v523 = vadd.f32 %v409, %v411
  %v524 = vrot.slane %v523, 4
  %v525 = vadd.f32 %v523, %v524
  %v526 = vrot.slane %v525, 2
  %v527 = vadd.f32 %v525, %v526
  %v528 = vrot.slane %v527, 1
  %v529 = vadd.f32 %v527, %v528
  %v530 = vadd.f32 %v410, %v412
  %v531 = vrot.slane %v530, 4
  %v532 = vadd.f32 %v530, %v531
  %v533 = vrot.slane %v532, 2
  %v534 = vadd.f32 %v532, %v533
  %v535 = vrot.slane %v534, 1
  %v536 = vadd.f32 %v534, %v535
  %v537 = vadd.f32 %v413, %v415
  %v538 = vrot.slane %v537, 4
  %v539 = vadd.f32 %v537, %v538
  %v540 = vrot.slane %v539, 2
  %v541 = vadd.f32 %v539, %v540
  %v542 = vrot.slane %v541, 1
  %v543 = vadd.f32 %v541, %v542
  %v544 = vadd.f32 %v414, %v416
  %v545 = vrot.slane %v544, 4
  %v546 = vadd.f32 %v544, %v545
  %v547 = vrot.slane %v546, 2
  %v548 = vadd.f32 %v546, %v547
  %v549 = vrot.slane %v548, 1
  %v550 = vadd.f32 %v548, %v549
  %v551 = vadd.f32 %v417, %v419
  %v552 = vrot.slane %v551, 4
  %v553 = vadd.f32 %v551, %v552
  %v554 = vrot.slane %v553, 2
  %v555 = vadd.f32 %v553, %v554
  %v556 = vrot.slane %v555, 1
  %v557 = vadd.f32 %v555, %v556
  %v558 = vadd.f32 %v418, %v420
  %v559 = vrot.slane %v558, 4
  %v560 = vadd.f32 %v558, %v559
  %v561 = vrot.slane %v560, 2
  %v562 = vadd.f32 %v560, %v561
  %v563 = vrot.slane %v562, 1
  %v564 = vadd.f32 %v562, %v563
  %v565 = vadd.f32 %v421, %v423
  %v566 = vrot.slane %v565, 4
  %v567 = vadd.f32 %v565, %v566
  %v568 = vrot.slane %v567, 2
  %v569 = vadd.f32 %v567, %v568
  %v570 = vrot.slane %v569, 1
  %v571 = vadd.f32 %v569, %v570
  %v572 = vadd.f32 %v422, %v424
  %v573 = vrot.slane %v572, 4
  %v574 = vadd.f32 %v572, %v573
  %v575 = vrot.slane %v574, 2
  %v576 = vadd.f32 %v574, %v575
  %v577 = vrot.slane %v576, 1
  %v578 = vadd.f32 %v576, %v577
  %v579 = vadd.f32 %v425, %v427
  %v580 = vrot.slane %v579, 4
  %v581 = vadd.f32 %v579, %v580
  %v582 = vrot.slane %v581, 2
  %v583 = vadd.f32 %v581, %v582
  %v584 = vrot.slane %v583, 1
  %v585 = vadd.f32 %v583, %v584
  %v586 = vadd.f32 %v426, %v428
  %v587 = vrot.slane %v586, 4
  %v588 = vadd.f32 %v586, %v587
  %v589 = vrot.slane %v588, 2
  %v590 = vadd.f32 %v588, %v589
  %v591 = vrot.slane %v590, 1
  %v592 = vadd.f32 %v590, %v591
  %v593 = vadd.f32 %v429, %v431
  %v594 = vrot.slane %v593, 4
  %v595 = vadd.f32 %v593, %v594
  %v596 = vrot.slane %v595, 2
  %v597 = vadd.f32 %v595, %v596
  %v598 = vrot.slane %v597, 1
  %v599 = vadd.f32 %v597, %v598
  %v600 = vadd.f32 %v430, %v432
  %v601 = vrot.slane %v600, 4
  %v602 = vadd.f32 %v600, %v601
  %v603 = vrot.slane %v602, 2
  %v604 = vadd.f32 %v602, %v603
  %v605 = vrot.slane %v604, 1
  %v606 = vadd.f32 %v604, %v605
  %v607 = vadd.f32 %v433, %v435
  %v608 = vrot.slane %v607, 4
  %v609 = vadd.f32 %v607, %v608
  %v610 = vrot.slane %v609, 2
  %v611 = vadd.f32 %v609, %v610
  %v612 = vrot.slane %v611, 1
  %v613 = vadd.f32 %v611, %v612
  %v614 = vadd.f32 %v434, %v436
  %v615 = vrot.slane %v614, 4
  %v616 = vadd.f32 %v614, %v615
  %v617 = vrot.slane %v616, 2
  %v618 = vadd.f32 %v616, %v617
  %v619 = vrot.slane %v618, 1
  %v620 = vadd.f32 %v618, %v619
  %v621 = vadd.f32 %v437, %v439
  %v622 = vrot.slane %v621, 4
  %v623 = vadd.f32 %v621, %v622
  %v624 = vrot.slane %v623, 2
  %v625 = vadd.f32 %v623, %v624
  %v626 = vrot.slane %v625, 1
  %v627 = vadd.f32 %v625, %v626
  %v628 = vadd.f32 %v438, %v440
  %v629 = vrot.slane %v628, 4
  %v630 = vadd.f32 %v628, %v629
  %v631 = vrot.slane %v630, 2
  %v632 = vadd.f32 %v630, %v631
  %v633 = vrot.slane %v632, 1
  %v634 = vadd.f32 %v632, %v633
  %v635 = vadd.f32 %v441, %v443
  %v636 = vrot.slane %v635, 4
  %v637 = vadd.f32 %v635, %v636
  %v638 = vrot.slane %v637, 2
  %v639 = vadd.f32 %v637, %v638
  %v640 = vrot.slane %v639, 1
  %v641 = vadd.f32 %v639, %v640
  %v642 = vadd.f32 %v442, %v444
  %v643 = vrot.slane %v642, 4
  %v644 = vadd.f32 %v642, %v643
  %v645 = vrot.slane %v644, 2
  %v646 = vadd.f32 %v644, %v645
  %v647 = vrot.slane %v646, 1
  %v648 = vadd.f32 %v646, %v647
  %v649 = vadd.f32 %v445, %v447
  %v650 = vrot.slane %v649, 4
  %v651 = vadd.f32 %v649, %v650
  %v652 = vrot.slane %v651, 2
  %v653 = vadd.f32 %v651, %v652
  %v654 = vrot.slane %v653, 1
  %v655 = vadd.f32 %v653, %v654
  %v656 = vadd.f32 %v446, %v448
  %v657 = vrot.slane %v656, 4
  %v658 = vadd.f32 %v656, %v657
  %v659 = vrot.slane %v658, 2
  %v660 = vadd.f32 %v658, %v659
  %v661 = vrot.slane %v660, 1
  %v662 = vadd.f32 %v660, %v661
  %v663 = vadd.f32 %v449, %v451
  %v664 = vrot.slane %v663, 4
  %v665 = vadd.f32 %v663, %v664
  %v666 = vrot.slane %v665, 2
  %v667 = vadd.f32 %v665, %v666
  %v668 = vrot.slane %v667, 1
  %v669 = vadd.f32 %v667, %v668
  %v670 = vadd.f32 %v450, %v452
  %v671 = vrot.slane %v670, 4
  %v672 = vadd.f32 %v670, %v671
  %v673 = vrot.slane %v672, 2
  %v674 = vadd.f32 %v672, %v673
  %v675 = vrot.slane %v674, 1
  %v676 = vadd.f32 %v674, %v675
  %677 = vset.pattern.permute.xlu0 2
  %678 = vperm.xlu0 %677, %v81
  %v679 = vpop.permute.xlu0 %678
  %681 = vset.pattern.permute.xlu0 2
  %682 = vperm.xlu0 %681, %v82
  %v683 = vpop.permute.xlu0 %682
  %v685 = vmul.f32 %v17, %v679
  %v686 = vmul.f32 %v18, %v679
  %v687 = vmul.f32 %v19, %v683
  %v688 = vmul.f32 %v20, %v683
  %v689 = vmul.f32 %v21, %v679
  %v690 = vmul.f32 %v22, %v679
  %v691 = vmul.f32 %v23, %v683
  %v692 = vmul.f32 %v24, %v683
  %v693 = vmul.f32 %v25, %v679
  %v694 = vmul.f32 %v26, %v679
  %v695 = vmul.f32 %v27, %v683
  %v696 = vmul.f32 %v28, %v683
  %v697 = vmul.f32 %v29, %v679
  %v698 = vmul.f32 %v30, %v679
  %v699 = vmul.f32 %v31, %v683
  %v700 = vmul.f32 %v32, %v683
  %v701 = vmul.f32 %v33, %v679
  %v702 = vmul.f32 %v34, %v679
  %v703 = vmul.f32 %v35, %v683
  %v704 = vmul.f32 %v36, %v683
  %v705 = vmul.f32 %v37, %v679
  %v706 = vmul.f32 %v38, %v679
  %v707 = vmul.f32 %v39, %v683
  %v708 = vmul.f32 %v40, %v683
  %v709 = vmul.f32 %v41, %v679
  %v710 = vmul.f32 %v42, %v679
  %v711 = vmul.f32 %v43, %v683
  %v712 = vmul.f32 %v44, %v683
  %v713 = vmul.f32 %v45, %v679
  %v714 = vmul.f32 %v46, %v679
  %v715 = vmul.f32 %v47, %v683
  %v716 = vmul.f32 %v48, %v683
  %v717 = vmul.f32 %v49, %v679
  %v718 = vmul.f32 %v50, %v679
  %v719 = vmul.f32 %v51, %v683
  %v720 = vmul.f32 %v52, %v683
  %v721 = vmul.f32 %v53, %v679
  %v722 = vmul.f32 %v54, %v679
  %v723 = vmul.f32 %v55, %v683
  %v724 = vmul.f32 %v56, %v683
  %v725 = vmul.f32 %v57, %v679
  %v726 = vmul.f32 %v58, %v679
  %v727 = vmul.f32 %v59, %v683
  %v728 = vmul.f32 %v60, %v683
  %v729 = vmul.f32 %v61, %v679
  %v730 = vmul.f32 %v62, %v679
  %v731 = vmul.f32 %v63, %v683
  %v732 = vmul.f32 %v64, %v683
  %v733 = vmul.f32 %v65, %v679
  %v734 = vmul.f32 %v66, %v679
  %v735 = vmul.f32 %v67, %v683
  %v736 = vmul.f32 %v68, %v683
  %v737 = vmul.f32 %v69, %v679
  %v738 = vmul.f32 %v70, %v679
  %v739 = vmul.f32 %v71, %v683
  %v740 = vmul.f32 %v72, %v683
  %v741 = vmul.f32 %v73, %v679
  %v742 = vmul.f32 %v74, %v679
  %v743 = vmul.f32 %v75, %v683
  %v744 = vmul.f32 %v76, %v683
  %v745 = vmul.f32 %v77, %v679
  %v746 = vmul.f32 %v78, %v679
  %v747 = vmul.f32 %v79, %v683
  %v748 = vmul.f32 %v80, %v683
  %v749 = vadd.f32 %v685, %v687
  %v750 = vrot.slane %v749, 4
  %v751 = vadd.f32 %v749, %v750
  %v752 = vrot.slane %v751, 2
  %v753 = vadd.f32 %v751, %v752
  %v754 = vrot.slane %v753, 1
  %v755 = vadd.f32 %v753, %v754
  %v756 = vadd.f32 %v686, %v688
  %v757 = vrot.slane %v756, 4
  %v758 = vadd.f32 %v756, %v757
  %v759 = vrot.slane %v758, 2
  %v760 = vadd.f32 %v758, %v759
  %v761 = vrot.slane %v760, 1
  %v762 = vadd.f32 %v760, %v761
  %v763 = vadd.f32 %v689, %v691
  %v764 = vrot.slane %v763, 4
  %v765 = vadd.f32 %v763, %v764
  %v766 = vrot.slane %v765, 2
  %v767 = vadd.f32 %v765, %v766
  %v768 = vrot.slane %v767, 1
  %v769 = vadd.f32 %v767, %v768
  %v770 = vadd.f32 %v690, %v692
  %v771 = vrot.slane %v770, 4
  %v772 = vadd.f32 %v770, %v771
  %v773 = vrot.slane %v772, 2
  %v774 = vadd.f32 %v772, %v773
  %v775 = vrot.slane %v774, 1
  %v776 = vadd.f32 %v774, %v775
  %v777 = vadd.f32 %v693, %v695
  %v778 = vrot.slane %v777, 4
  %v779 = vadd.f32 %v777, %v778
  %v780 = vrot.slane %v779, 2
  %v781 = vadd.f32 %v779, %v780
  %v782 = vrot.slane %v781, 1
  %v783 = vadd.f32 %v781, %v782
  %v784 = vadd.f32 %v694, %v696
  %v785 = vrot.slane %v784, 4
  %v786 = vadd.f32 %v784, %v785
  %v787 = vrot.slane %v786, 2
  %v788 = vadd.f32 %v786, %v787
  %v789 = vrot.slane %v788, 1
  %v790 = vadd.f32 %v788, %v789
  %v791 = vadd.f32 %v697, %v699
  %v792 = vrot.slane %v791, 4
  %v793 = vadd.f32 %v791, %v792
  %v794 = vrot.slane %v793, 2
  %v795 = vadd.f32 %v793, %v794
  %v796 = vrot.slane %v795, 1
  %v797 = vadd.f32 %v795, %v796
  %v798 = vadd.f32 %v698, %v700
  %v799 = vrot.slane %v798, 4
  %v800 = vadd.f32 %v798, %v799
  %v801 = vrot.slane %v800, 2
  %v802 = vadd.f32 %v800, %v801
  %v803 = vrot.slane %v802, 1
  %v804 = vadd.f32 %v802, %v803
  %v805 = vadd.f32 %v701, %v703
  %v806 = vrot.slane %v805, 4
  %v807 = vadd.f32 %v805, %v806
  %v808 = vrot.slane %v807, 2
  %v809 = vadd.f32 %v807, %v808
  %v810 = vrot.slane %v809, 1
  %v811 = vadd.f32 %v809, %v810
  %v812 = vadd.f32 %v702, %v704
  %v813 = vrot.slane %v812, 4
  %v814 = vadd.f32 %v812, %v813
  %v815 = vrot.slane %v814, 2
  %v816 = vadd.f32 %v814, %v815
  %v817 = vrot.slane %v816, 1
  %v818 = vadd.f32 %v816, %v817
  %v819 = vadd.f32 %v705, %v707
  %v820 = vrot.slane %v819, 4
  %v821 = vadd.f32 %v819, %v820
  %v822 = vrot.slane %v821, 2
  %v823 = vadd.f32 %v821, %v822
  %v824 = vrot.slane %v823, 1
  %v825 = vadd.f32 %v823, %v824
  %v826 = vadd.f32 %v706, %v708
  %v827 = vrot.slane %v826, 4
  %v828 = vadd.f32 %v826, %v827
  %v829 = vrot.slane %v828, 2
  %v830 = vadd.f32 %v828, %v829
  %v831 = vrot.slane %v830, 1
  %v832 = vadd.f32 %v830, %v831
  %v833 = vadd.f32 %v709, %v711
  %v834 = vrot.slane %v833, 4
  %v835 = vadd.f32 %v833, %v834
  %v836 = vrot.slane %v835, 2
  %v837 = vadd.f32 %v835, %v836
  %v838 = vrot.slane %v837, 1
  %v839 = vadd.f32 %v837, %v838
  %v840 = vadd.f32 %v710, %v712
  %v841 = vrot.slane %v840, 4
  %v842 = vadd.f32 %v840, %v841
  %v843 = vrot.slane %v842, 2
  %v844 = vadd.f32 %v842, %v843
  %v845 = vrot.slane %v844, 1
  %v846 = vadd.f32 %v844, %v845
  %v847 = vadd.f32 %v713, %v715
  %v848 = vrot.slane %v847, 4
  %v849 = vadd.f32 %v847, %v848
  %v850 = vrot.slane %v849, 2
  %v851 = vadd.f32 %v849, %v850
  %v852 = vrot.slane %v851, 1
  %v853 = vadd.f32 %v851, %v852
  %v854 = vadd.f32 %v714, %v716
  %v855 = vrot.slane %v854, 4
  %v856 = vadd.f32 %v854, %v855
  %v857 = vrot.slane %v856, 2
  %v858 = vadd.f32 %v856, %v857
  %v859 = vrot.slane %v858, 1
  %v860 = vadd.f32 %v858, %v859
  %v861 = vadd.f32 %v717, %v719
  %v862 = vrot.slane %v861, 4
  %v863 = vadd.f32 %v861, %v862
  %v864 = vrot.slane %v863, 2
  %v865 = vadd.f32 %v863, %v864
  %v866 = vrot.slane %v865, 1
  %v867 = vadd.f32 %v865, %v866
  %v868 = vadd.f32 %v718, %v720
  %v869 = vrot.slane %v868, 4
  %v870 = vadd.f32 %v868, %v869
  %v871 = vrot.slane %v870, 2
  %v872 = vadd.f32 %v870, %v871
  %v873 = vrot.slane %v872, 1
  %v874 = vadd.f32 %v872, %v873
  %v875 = vadd.f32 %v721, %v723
  %v876 = vrot.slane %v875, 4
  %v877 = vadd.f32 %v875, %v876
  %v878 = vrot.slane %v877, 2
  %v879 = vadd.f32 %v877, %v878
  %v880 = vrot.slane %v879, 1
  %v881 = vadd.f32 %v879, %v880
  %v882 = vadd.f32 %v722, %v724
  %v883 = vrot.slane %v882, 4
  %v884 = vadd.f32 %v882, %v883
  %v885 = vrot.slane %v884, 2
  %v886 = vadd.f32 %v884, %v885
  %v887 = vrot.slane %v886, 1
  %v888 = vadd.f32 %v886, %v887
  %v889 = vadd.f32 %v725, %v727
  %v890 = vrot.slane %v889, 4
  %v891 = vadd.f32 %v889, %v890
  %v892 = vrot.slane %v891, 2
  %v893 = vadd.f32 %v891, %v892
  %v894 = vrot.slane %v893, 1
  %v895 = vadd.f32 %v893, %v894
  %v896 = vadd.f32 %v726, %v728
  %v897 = vrot.slane %v896, 4
  %v898 = vadd.f32 %v896, %v897
  %v899 = vrot.slane %v898, 2
  %v900 = vadd.f32 %v898, %v899
  %v901 = vrot.slane %v900, 1
  %v902 = vadd.f32 %v900, %v901
  %v903 = vadd.f32 %v729, %v731
  %v904 = vrot.slane %v903, 4
  %v905 = vadd.f32 %v903, %v904
  %v906 = vrot.slane %v905, 2
  %v907 = vadd.f32 %v905, %v906
  %v908 = vrot.slane %v907, 1
  %v909 = vadd.f32 %v907, %v908
  %v910 = vadd.f32 %v730, %v732
  %v911 = vrot.slane %v910, 4
  %v912 = vadd.f32 %v910, %v911
  %v913 = vrot.slane %v912, 2
  %v914 = vadd.f32 %v912, %v913
  %v915 = vrot.slane %v914, 1
  %v916 = vadd.f32 %v914, %v915
  %v917 = vadd.f32 %v733, %v735
  %v918 = vrot.slane %v917, 4
  %v919 = vadd.f32 %v917, %v918
  %v920 = vrot.slane %v919, 2
  %v921 = vadd.f32 %v919, %v920
  %v922 = vrot.slane %v921, 1
  %v923 = vadd.f32 %v921, %v922
  %v924 = vadd.f32 %v734, %v736
  %v925 = vrot.slane %v924, 4
  %v926 = vadd.f32 %v924, %v925
  %v927 = vrot.slane %v926, 2
  %v928 = vadd.f32 %v926, %v927
  %v929 = vrot.slane %v928, 1
  %v930 = vadd.f32 %v928, %v929
  %v931 = vadd.f32 %v737, %v739
  %v932 = vrot.slane %v931, 4
  %v933 = vadd.f32 %v931, %v932
  %v934 = vrot.slane %v933, 2
  %v935 = vadd.f32 %v933, %v934
  %v936 = vrot.slane %v935, 1
  %v937 = vadd.f32 %v935, %v936
  %v938 = vadd.f32 %v738, %v740
  %v939 = vrot.slane %v938, 4
  %v940 = vadd.f32 %v938, %v939
  %v941 = vrot.slane %v940, 2
  %v942 = vadd.f32 %v940, %v941
  %v943 = vrot.slane %v942, 1
  %v944 = vadd.f32 %v942, %v943
  %v945 = vadd.f32 %v741, %v743
  %v946 = vrot.slane %v945, 4
  %v947 = vadd.f32 %v945, %v946
  %v948 = vrot.slane %v947, 2
  %v949 = vadd.f32 %v947, %v948
  %v950 = vrot.slane %v949, 1
  %v951 = vadd.f32 %v949, %v950
  %v952 = vadd.f32 %v742, %v744
  %v953 = vrot.slane %v952, 4
  %v954 = vadd.f32 %v952, %v953
  %v955 = vrot.slane %v954, 2
  %v956 = vadd.f32 %v954, %v955
  %v957 = vrot.slane %v956, 1
  %v958 = vadd.f32 %v956, %v957
  %v959 = vadd.f32 %v745, %v747
  %v960 = vrot.slane %v959, 4
  %v961 = vadd.f32 %v959, %v960
  %v962 = vrot.slane %v961, 2
  %v963 = vadd.f32 %v961, %v962
  %v964 = vrot.slane %v963, 1
  %v965 = vadd.f32 %v963, %v964
  %v966 = vadd.f32 %v746, %v748
  %v967 = vrot.slane %v966, 4
  %v968 = vadd.f32 %v966, %v967
  %v969 = vrot.slane %v968, 2
  %v970 = vadd.f32 %v968, %v969
  %v971 = vrot.slane %v970, 1
  %v972 = vadd.f32 %v970, %v971
  %vm1005 = vcmask 1041409
  %v1006 = vsel %vm1005, %v177, %v163
  %vm1007 = vcmask 1042434
  %v1008 = vsel %vm1007, %v191, %v1006
  %vm1009 = vcmask 1043459
  %v1010 = vsel %vm1009, %v205, %v1008
  %vm1011 = vcmask 1044484
  %v1012 = vsel %vm1011, %v219, %v1010
  %vm1013 = vcmask 1045509
  %v1014 = vsel %vm1013, %v233, %v1012
  %vm1015 = vcmask 1046534
  %v1016 = vsel %vm1015, %v247, %v1014
  %vm1017 = vcmask 1047559
  %v1018 = vsel %vm1017, %v261, %v1016
  %v1019 = vsel %vm1005, %v184, %v170
  %v1020 = vsel %vm1007, %v198, %v1019
  %v1021 = vsel %vm1009, %v212, %v1020
  %v1022 = vsel %vm1011, %v226, %v1021
  %v1023 = vsel %vm1013, %v240, %v1022
  %v1024 = vsel %vm1015, %v254, %v1023
  %v1025 = vsel %vm1017, %v268, %v1024
  %v1026 = vsel %vm1005, %v289, %v275
  %v1027 = vsel %vm1007, %v303, %v1026
  %v1028 = vsel %vm1009, %v317, %v1027
  %v1029 = vsel %vm1011, %v331, %v1028
  %v1030 = vsel %vm1013, %v345, %v1029
  %v1031 = vsel %vm1015, %v359, %v1030
  %v1032 = vsel %vm1017, %v373, %v1031
  %v1033 = vsel %vm1005, %v296, %v282
  %v1034 = vsel %vm1007, %v310, %v1033
  %v1035 = vsel %vm1009, %v324, %v1034
  %v1036 = vsel %vm1011, %v338, %v1035
  %v1037 = vsel %vm1013, %v352, %v1036
  %v1038 = vsel %vm1015, %v366, %v1037
  %v1039 = vsel %vm1017, %v380, %v1038
  %v1076 = vsel %vm1005, %v473, %v459
  %v1077 = vsel %vm1007, %v487, %v1076
  %v1078 = vsel %vm1009, %v501, %v1077
  %v1079 = vsel %vm1011, %v515, %v1078
  %v1080 = vsel %vm1013, %v529, %v1079
  %v1081 = vsel %vm1015, %v543, %v1080
  %v1082 = vsel %vm1017, %v557, %v1081
  %v1083 = vsel %vm1005, %v480, %v466
  %v1084 = vsel %vm1007, %v494, %v1083
  %v1085 = vsel %vm1009, %v508, %v1084
  %v1086 = vsel %vm1011, %v522, %v1085
  %v1087 = vsel %vm1013, %v536, %v1086
  %v1088 = vsel %vm1015, %v550, %v1087
  %v1089 = vsel %vm1017, %v564, %v1088
  %v1090 = vsel %vm1005, %v585, %v571
  %v1091 = vsel %vm1007, %v599, %v1090
  %v1092 = vsel %vm1009, %v613, %v1091
  %v1093 = vsel %vm1011, %v627, %v1092
  %v1094 = vsel %vm1013, %v641, %v1093
  %v1095 = vsel %vm1015, %v655, %v1094
  %v1096 = vsel %vm1017, %v669, %v1095
  %v1097 = vsel %vm1005, %v592, %v578
  %v1098 = vsel %vm1007, %v606, %v1097
  %v1099 = vsel %vm1009, %v620, %v1098
  %v1100 = vsel %vm1011, %v634, %v1099
  %v1101 = vsel %vm1013, %v648, %v1100
  %v1102 = vsel %vm1015, %v662, %v1101
  %v1103 = vsel %vm1017, %v676, %v1102
  %v1140 = vsel %vm1005, %v769, %v755
  %v1141 = vsel %vm1007, %v783, %v1140
  %v1142 = vsel %vm1009, %v797, %v1141
  %v1143 = vsel %vm1011, %v811, %v1142
  %v1144 = vsel %vm1013, %v825, %v1143
  %v1145 = vsel %vm1015, %v839, %v1144
  %v1146 = vsel %vm1017, %v853, %v1145
  %v1147 = vsel %vm1005, %v776, %v762
  %v1148 = vsel %vm1007, %v790, %v1147
  %v1149 = vsel %vm1009, %v804, %v1148
  %v1150 = vsel %vm1011, %v818, %v1149
  %v1151 = vsel %vm1013, %v832, %v1150
  %v1152 = vsel %vm1015, %v846, %v1151
  %v1153 = vsel %vm1017, %v860, %v1152
  %v1154 = vsel %vm1005, %v881, %v867
  %v1155 = vsel %vm1007, %v895, %v1154
  %v1156 = vsel %vm1009, %v909, %v1155
  %v1157 = vsel %vm1011, %v923, %v1156
  %v1158 = vsel %vm1013, %v937, %v1157
  %v1159 = vsel %vm1015, %v951, %v1158
  %v1160 = vsel %vm1017, %v965, %v1159
  %v1161 = vsel %vm1005, %v888, %v874
  %v1162 = vsel %vm1007, %v902, %v1161
  %v1163 = vsel %vm1009, %v916, %v1162
  %v1164 = vsel %vm1011, %v930, %v1163
  %v1165 = vsel %vm1013, %v944, %v1164
  %v1166 = vsel %vm1015, %v958, %v1165
  %v1167 = vsel %vm1017, %v972, %v1166
  %v1172 = vld [vmem:[%s2] sm:$0xff]
  %v1173 = vld [vmem:[%s2 + $0x8] sm:$0xff]
  %v1174 = vld [vmem:[%s2 + $0x10] sm:$0xff]
  %v1175 = vld [vmem:[%s2 + $0x18] sm:$0xff]
  %v1176 = vld [vmem:[%s2 + $0x20] sm:$0xff]
  %v1177 = vld [vmem:[%s2 + $0x28] sm:$0xff]
  %1179 = vset.pattern.permute.xlu0 0
  %1180 = vperm.xlu0 %1179, %v1172
  %v1181 = vpop.permute.xlu0 %1180
  %1184 = vset.pattern.permute.xlu0 0
  %1185 = vperm.xlu0 %1184, %v1173
  %v1186 = vpop.permute.xlu0 %1185
  %1189 = vset.pattern.permute.xlu0 0
  %1190 = vperm.xlu0 %1189, %v1174
  %v1191 = vpop.permute.xlu0 %1190
  %1194 = vset.pattern.permute.xlu0 0
  %1195 = vperm.xlu0 %1194, %v1175
  %v1196 = vpop.permute.xlu0 %1195
  %1199 = vset.pattern.permute.xlu0 0
  %1200 = vperm.xlu0 %1199, %v1176
  %v1201 = vpop.permute.xlu0 %1200
  %1204 = vset.pattern.permute.xlu0 0
  %1205 = vperm.xlu0 %1204, %v1177
  %v1206 = vpop.permute.xlu0 %1205
  %v1208 = vadd.f32 %v1018, %v1181
  %v1209 = vadd.f32 %v1025, %v1181
  %v1210 = vadd.f32 %v1032, %v1186
  %v1211 = vadd.f32 %v1039, %v1186
  %v1212 = vadd.f32 %v1082, %v1191
  %v1213 = vadd.f32 %v1089, %v1191
  %v1214 = vadd.f32 %v1096, %v1196
  %v1215 = vadd.f32 %v1103, %v1196
  %v1216 = vadd.f32 %v1146, %v1201
  %v1217 = vadd.f32 %v1153, %v1201
  %v1218 = vadd.f32 %v1160, %v1206
  %v1219 = vadd.f32 %v1167, %v1206
  %v1220 = vpack.c.bf16 %v1210, %v1208
  %v1221 = vpack.c.bf16 %v1211, %v1209
  %v1222 = vpack.c.bf16 %v1214, %v1212
  %v1223 = vpack.c.bf16 %v1215, %v1213
  %v1224 = vpack.c.bf16 %v1218, %v1216
  %v1225 = vpack.c.bf16 %v1219, %v1217
  %v1226 = vld [vmem:[%s3] sm:$0xff]
  %v1227 = vld [vmem:[%s3 + $0x8] sm:$0xff]
  %v1228 = vld [vmem:[%s3 + $0x10] sm:$0xff]
  %v1229 = vld [vmem:[%s3 + $0x18] sm:$0xff]
  %v1230 = vld [vmem:[%s3 + $0x20] sm:$0xff]
  %v1231 = vld [vmem:[%s3 + $0x28] sm:$0xff]
  %v1232 = vld [vmem:[%s3 + $0x30] sm:$0xff]
  %v1233 = vld [vmem:[%s3 + $0x38] sm:$0xff]
  %v1234 = vld [vmem:[%s3 + $0x40] sm:$0xff]
  %v1235 = vld [vmem:[%s3 + $0x48] sm:$0xff]
  %v1236 = vld [vmem:[%s3 + $0x50] sm:$0xff]
  %v1237 = vld [vmem:[%s3 + $0x58] sm:$0xff]
  %v1238 = vld [vmem:[%s3 + $0x60] sm:$0xff]
  %v1239 = vld [vmem:[%s3 + $0x68] sm:$0xff]
  %v1240 = vld [vmem:[%s3 + $0x70] sm:$0xff]
  %v1241 = vld [vmem:[%s3 + $0x78] sm:$0xff]
  %v1242 = vld [vmem:[%s3 + $0x80] sm:$0xff]
  %v1243 = vld [vmem:[%s3 + $0x88] sm:$0xff]
  %v1244 = vld [vmem:[%s3 + $0x90] sm:$0xff]
  %v1245 = vld [vmem:[%s3 + $0x98] sm:$0xff]
  %v1246 = vld [vmem:[%s3 + $0xa0] sm:$0xff]
  %v1247 = vld [vmem:[%s3 + $0xa8] sm:$0xff]
  %v1248 = vld [vmem:[%s3 + $0xb0] sm:$0xff]
  %v1249 = vld [vmem:[%s3 + $0xb8] sm:$0xff]
  %v1250 = vld [vmem:[%s3 + $0xc0] sm:$0xff]
  %v1251 = vld [vmem:[%s3 + $0xc8] sm:$0xff]
  %v1252 = vld [vmem:[%s3 + $0xd0] sm:$0xff]
  %v1253 = vld [vmem:[%s3 + $0xd8] sm:$0xff]
  %v1254 = vld [vmem:[%s3 + $0xe0] sm:$0xff]
  %v1255 = vld [vmem:[%s3 + $0xe8] sm:$0xff]
  %v1256 = vld [vmem:[%s3 + $0xf0] sm:$0xff]
  %v1257 = vld [vmem:[%s3 + $0xf8] sm:$0xff]
  %v1258 = vld [vmem:[%s3 + $0x100] sm:$0xff]
  %v1259 = vld [vmem:[%s3 + $0x108] sm:$0xff]
  %v1260 = vld [vmem:[%s3 + $0x110] sm:$0xff]
  %v1261 = vld [vmem:[%s3 + $0x118] sm:$0xff]
  %v1262 = vld [vmem:[%s3 + $0x120] sm:$0xff]
  %v1263 = vld [vmem:[%s3 + $0x128] sm:$0xff]
  %v1264 = vld [vmem:[%s3 + $0x130] sm:$0xff]
  %v1265 = vld [vmem:[%s3 + $0x138] sm:$0xff]
  %v1266 = vld [vmem:[%s3 + $0x140] sm:$0xff]
  %v1267 = vld [vmem:[%s3 + $0x148] sm:$0xff]
  %v1268 = vld [vmem:[%s3 + $0x150] sm:$0xff]
  %v1269 = vld [vmem:[%s3 + $0x158] sm:$0xff]
  %v1270 = vld [vmem:[%s3 + $0x160] sm:$0xff]
  %v1271 = vld [vmem:[%s3 + $0x168] sm:$0xff]
  %v1272 = vld [vmem:[%s3 + $0x170] sm:$0xff]
  %v1273 = vld [vmem:[%s3 + $0x178] sm:$0xff]
  %v1274 = vld [vmem:[%s3 + $0x180] sm:$0xff]
  %v1275 = vld [vmem:[%s3 + $0x188] sm:$0xff]
  %v1276 = vld [vmem:[%s3 + $0x190] sm:$0xff]
  %v1277 = vld [vmem:[%s3 + $0x198] sm:$0xff]
  %v1278 = vld [vmem:[%s3 + $0x1a0] sm:$0xff]
  %v1279 = vld [vmem:[%s3 + $0x1a8] sm:$0xff]
  %v1280 = vld [vmem:[%s3 + $0x1b0] sm:$0xff]
  %v1281 = vld [vmem:[%s3 + $0x1b8] sm:$0xff]
  %v1282 = vld [vmem:[%s3 + $0x1c0] sm:$0xff]
  %v1283 = vld [vmem:[%s3 + $0x1c8] sm:$0xff]
  %v1284 = vld [vmem:[%s3 + $0x1d0] sm:$0xff]
  %v1285 = vld [vmem:[%s3 + $0x1d8] sm:$0xff]
  %v1286 = vld [vmem:[%s3 + $0x1e0] sm:$0xff]
  %v1287 = vld [vmem:[%s3 + $0x1e8] sm:$0xff]
  %v1288 = vld [vmem:[%s3 + $0x1f0] sm:$0xff]
  %v1289 = vld [vmem:[%s3 + $0x1f8] sm:$0xff]
  %v1290 = vld [vmem:[%s3 + $0x200] sm:$0xff]
  %v1291 = vld [vmem:[%s3 + $0x208] sm:$0xff]
  %v1292 = vld [vmem:[%s3 + $0x210] sm:$0xff]
  %v1293 = vld [vmem:[%s3 + $0x218] sm:$0xff]
  %v1294 = vld [vmem:[%s3 + $0x220] sm:$0xff]
  %v1295 = vld [vmem:[%s3 + $0x228] sm:$0xff]
  %v1296 = vld [vmem:[%s3 + $0x230] sm:$0xff]
  %v1297 = vld [vmem:[%s3 + $0x238] sm:$0xff]
  %v1298 = vld [vmem:[%s3 + $0x240] sm:$0xff]
  %v1299 = vld [vmem:[%s3 + $0x248] sm:$0xff]
  %v1300 = vld [vmem:[%s3 + $0x250] sm:$0xff]
  %v1301 = vld [vmem:[%s3 + $0x258] sm:$0xff]
  %v1302 = vld [vmem:[%s3 + $0x260] sm:$0xff]
  %v1303 = vld [vmem:[%s3 + $0x268] sm:$0xff]
  %v1304 = vld [vmem:[%s3 + $0x270] sm:$0xff]
  %v1305 = vld [vmem:[%s3 + $0x278] sm:$0xff]
  %v1306 = vld [vmem:[%s3 + $0x280] sm:$0xff]
  %v1307 = vld [vmem:[%s3 + $0x288] sm:$0xff]
  %v1308 = vld [vmem:[%s3 + $0x290] sm:$0xff]
  %v1309 = vld [vmem:[%s3 + $0x298] sm:$0xff]
  %v1310 = vld [vmem:[%s3 + $0x2a0] sm:$0xff]
  %v1311 = vld [vmem:[%s3 + $0x2a8] sm:$0xff]
  %v1312 = vld [vmem:[%s3 + $0x2b0] sm:$0xff]
  %v1313 = vld [vmem:[%s3 + $0x2b8] sm:$0xff]
  %v1314 = vld [vmem:[%s3 + $0x2c0] sm:$0xff]
  %v1315 = vld [vmem:[%s3 + $0x2c8] sm:$0xff]
  %v1316 = vld [vmem:[%s3 + $0x2d0] sm:$0xff]
  %v1317 = vld [vmem:[%s3 + $0x2d8] sm:$0xff]
  %v1318 = vld [vmem:[%s3 + $0x2e0] sm:$0xff]
  %v1319 = vld [vmem:[%s3 + $0x2e8] sm:$0xff]
  %v1320 = vld [vmem:[%s3 + $0x2f0] sm:$0xff]
  %v1321 = vld [vmem:[%s3 + $0x2f8] sm:$0xff]
  %v1322 = vld [vmem:[%s3 + $0x300] sm:$0xff]
  %v1323 = vld [vmem:[%s3 + $0x308] sm:$0xff]
  %v1324 = vld [vmem:[%s3 + $0x310] sm:$0xff]
  %v1325 = vld [vmem:[%s3 + $0x318] sm:$0xff]
  %v1326 = vld [vmem:[%s3 + $0x320] sm:$0xff]
  %v1327 = vld [vmem:[%s3 + $0x328] sm:$0xff]
  %v1328 = vld [vmem:[%s3 + $0x330] sm:$0xff]
  %v1329 = vld [vmem:[%s3 + $0x338] sm:$0xff]
  %v1330 = vld [vmem:[%s3 + $0x340] sm:$0xff]
  %v1331 = vld [vmem:[%s3 + $0x348] sm:$0xff]
  %v1332 = vld [vmem:[%s3 + $0x350] sm:$0xff]
  %v1333 = vld [vmem:[%s3 + $0x358] sm:$0xff]
  %v1334 = vld [vmem:[%s3 + $0x360] sm:$0xff]
  %v1335 = vld [vmem:[%s3 + $0x368] sm:$0xff]
  %v1336 = vld [vmem:[%s3 + $0x370] sm:$0xff]
  %v1337 = vld [vmem:[%s3 + $0x378] sm:$0xff]
  %v1338 = vld [vmem:[%s3 + $0x380] sm:$0xff]
  %v1339 = vld [vmem:[%s3 + $0x388] sm:$0xff]
  %v1340 = vld [vmem:[%s3 + $0x390] sm:$0xff]
  %v1341 = vld [vmem:[%s3 + $0x398] sm:$0xff]
  %v1342 = vld [vmem:[%s3 + $0x3a0] sm:$0xff]
  %v1343 = vld [vmem:[%s3 + $0x3a8] sm:$0xff]
  %v1344 = vld [vmem:[%s3 + $0x3b0] sm:$0xff]
  %v1345 = vld [vmem:[%s3 + $0x3b8] sm:$0xff]
  %v1346 = vld [vmem:[%s3 + $0x3c0] sm:$0xff]
  %v1347 = vld [vmem:[%s3 + $0x3c8] sm:$0xff]
  %v1348 = vld [vmem:[%s3 + $0x3d0] sm:$0xff]
  %v1349 = vld [vmem:[%s3 + $0x3d8] sm:$0xff]
  %v1350 = vld [vmem:[%s3 + $0x3e0] sm:$0xff]
  %v1351 = vld [vmem:[%s3 + $0x3e8] sm:$0xff]
  %v1352 = vld [vmem:[%s3 + $0x3f0] sm:$0xff]
  %v1353 = vld [vmem:[%s3 + $0x3f8] sm:$0xff]
  %v1482 = vunpack.c.l.b16 %v1226
  %v1483 = vunpack.c.h.b16 %v1226
  %v1484 = vunpack.c.l.b16 %v1227
  %v1485 = vunpack.c.h.b16 %v1227
  %v1486 = vunpack.c.l.b16 %v1228
  %v1487 = vunpack.c.h.b16 %v1228
  %v1488 = vunpack.c.l.b16 %v1229
  %v1489 = vunpack.c.h.b16 %v1229
  %v1490 = vunpack.c.l.b16 %v1230
  %v1491 = vunpack.c.h.b16 %v1230
  %v1492 = vunpack.c.l.b16 %v1231
  %v1493 = vunpack.c.h.b16 %v1231
  %v1494 = vunpack.c.l.b16 %v1232
  %v1495 = vunpack.c.h.b16 %v1232
  %v1496 = vunpack.c.l.b16 %v1233
  %v1497 = vunpack.c.h.b16 %v1233
  %v1498 = vunpack.c.l.b16 %v1234
  %v1499 = vunpack.c.h.b16 %v1234
  %v1500 = vunpack.c.l.b16 %v1235
  %v1501 = vunpack.c.h.b16 %v1235
  %v1502 = vunpack.c.l.b16 %v1236
  %v1503 = vunpack.c.h.b16 %v1236
  %v1504 = vunpack.c.l.b16 %v1237
  %v1505 = vunpack.c.h.b16 %v1237
  %v1506 = vunpack.c.l.b16 %v1238
  %v1507 = vunpack.c.h.b16 %v1238
  %v1508 = vunpack.c.l.b16 %v1239
  %v1509 = vunpack.c.h.b16 %v1239
  %v1510 = vunpack.c.l.b16 %v1240
  %v1511 = vunpack.c.h.b16 %v1240
  %v1512 = vunpack.c.l.b16 %v1241
  %v1513 = vunpack.c.h.b16 %v1241
  %v1514 = vunpack.c.l.b16 %v1242
  %v1515 = vunpack.c.h.b16 %v1242
  %v1516 = vunpack.c.l.b16 %v1243
  %v1517 = vunpack.c.h.b16 %v1243
  %v1518 = vunpack.c.l.b16 %v1244
  %v1519 = vunpack.c.h.b16 %v1244
  %v1520 = vunpack.c.l.b16 %v1245
  %v1521 = vunpack.c.h.b16 %v1245
  %v1522 = vunpack.c.l.b16 %v1246
  %v1523 = vunpack.c.h.b16 %v1246
  %v1524 = vunpack.c.l.b16 %v1247
  %v1525 = vunpack.c.h.b16 %v1247
  %v1526 = vunpack.c.l.b16 %v1248
  %v1527 = vunpack.c.h.b16 %v1248
  %v1528 = vunpack.c.l.b16 %v1249
  %v1529 = vunpack.c.h.b16 %v1249
  %v1530 = vunpack.c.l.b16 %v1250
  %v1531 = vunpack.c.h.b16 %v1250
  %v1532 = vunpack.c.l.b16 %v1251
  %v1533 = vunpack.c.h.b16 %v1251
  %v1534 = vunpack.c.l.b16 %v1252
  %v1535 = vunpack.c.h.b16 %v1252
  %v1536 = vunpack.c.l.b16 %v1253
  %v1537 = vunpack.c.h.b16 %v1253
  %v1538 = vunpack.c.l.b16 %v1254
  %v1539 = vunpack.c.h.b16 %v1254
  %v1540 = vunpack.c.l.b16 %v1255
  %v1541 = vunpack.c.h.b16 %v1255
  %v1542 = vunpack.c.l.b16 %v1256
  %v1543 = vunpack.c.h.b16 %v1256
  %v1544 = vunpack.c.l.b16 %v1257
  %v1545 = vunpack.c.h.b16 %v1257
  %v1546 = vunpack.c.l.b16 %v1258
  %v1547 = vunpack.c.h.b16 %v1258
  %v1548 = vunpack.c.l.b16 %v1259
  %v1549 = vunpack.c.h.b16 %v1259
  %v1550 = vunpack.c.l.b16 %v1260
  %v1551 = vunpack.c.h.b16 %v1260
  %v1552 = vunpack.c.l.b16 %v1261
  %v1553 = vunpack.c.h.b16 %v1261
  %v1554 = vunpack.c.l.b16 %v1262
  %v1555 = vunpack.c.h.b16 %v1262
  %v1556 = vunpack.c.l.b16 %v1263
  %v1557 = vunpack.c.h.b16 %v1263
  %v1558 = vunpack.c.l.b16 %v1264
  %v1559 = vunpack.c.h.b16 %v1264
  %v1560 = vunpack.c.l.b16 %v1265
  %v1561 = vunpack.c.h.b16 %v1265
  %v1562 = vunpack.c.l.b16 %v1266
  %v1563 = vunpack.c.h.b16 %v1266
  %v1564 = vunpack.c.l.b16 %v1267
  %v1565 = vunpack.c.h.b16 %v1267
  %v1566 = vunpack.c.l.b16 %v1268
  %v1567 = vunpack.c.h.b16 %v1268
  %v1568 = vunpack.c.l.b16 %v1269
  %v1569 = vunpack.c.h.b16 %v1269
  %v1570 = vunpack.c.l.b16 %v1270
  %v1571 = vunpack.c.h.b16 %v1270
  %v1572 = vunpack.c.l.b16 %v1271
  %v1573 = vunpack.c.h.b16 %v1271
  %v1574 = vunpack.c.l.b16 %v1272
  %v1575 = vunpack.c.h.b16 %v1272
  %v1576 = vunpack.c.l.b16 %v1273
  %v1577 = vunpack.c.h.b16 %v1273
  %v1578 = vunpack.c.l.b16 %v1274
  %v1579 = vunpack.c.h.b16 %v1274
  %v1580 = vunpack.c.l.b16 %v1275
  %v1581 = vunpack.c.h.b16 %v1275
  %v1582 = vunpack.c.l.b16 %v1276
  %v1583 = vunpack.c.h.b16 %v1276
  %v1584 = vunpack.c.l.b16 %v1277
  %v1585 = vunpack.c.h.b16 %v1277
  %v1586 = vunpack.c.l.b16 %v1278
  %v1587 = vunpack.c.h.b16 %v1278
  %v1588 = vunpack.c.l.b16 %v1279
  %v1589 = vunpack.c.h.b16 %v1279
  %v1590 = vunpack.c.l.b16 %v1280
  %v1591 = vunpack.c.h.b16 %v1280
  %v1592 = vunpack.c.l.b16 %v1281
  %v1593 = vunpack.c.h.b16 %v1281
  %v1594 = vunpack.c.l.b16 %v1282
  %v1595 = vunpack.c.h.b16 %v1282
  %v1596 = vunpack.c.l.b16 %v1283
  %v1597 = vunpack.c.h.b16 %v1283
  %v1598 = vunpack.c.l.b16 %v1284
  %v1599 = vunpack.c.h.b16 %v1284
  %v1600 = vunpack.c.l.b16 %v1285
  %v1601 = vunpack.c.h.b16 %v1285
  %v1602 = vunpack.c.l.b16 %v1286
  %v1603 = vunpack.c.h.b16 %v1286
  %v1604 = vunpack.c.l.b16 %v1287
  %v1605 = vunpack.c.h.b16 %v1287
  %v1606 = vunpack.c.l.b16 %v1288
  %v1607 = vunpack.c.h.b16 %v1288
  %v1608 = vunpack.c.l.b16 %v1289
  %v1609 = vunpack.c.h.b16 %v1289
  %v1610 = vunpack.c.l.b16 %v1290
  %v1611 = vunpack.c.h.b16 %v1290
  %v1612 = vunpack.c.l.b16 %v1291
  %v1613 = vunpack.c.h.b16 %v1291
  %v1614 = vunpack.c.l.b16 %v1292
  %v1615 = vunpack.c.h.b16 %v1292
  %v1616 = vunpack.c.l.b16 %v1293
  %v1617 = vunpack.c.h.b16 %v1293
  %v1618 = vunpack.c.l.b16 %v1294
  %v1619 = vunpack.c.h.b16 %v1294
  %v1620 = vunpack.c.l.b16 %v1295
  %v1621 = vunpack.c.h.b16 %v1295
  %v1622 = vunpack.c.l.b16 %v1296
  %v1623 = vunpack.c.h.b16 %v1296
  %v1624 = vunpack.c.l.b16 %v1297
  %v1625 = vunpack.c.h.b16 %v1297
  %v1626 = vunpack.c.l.b16 %v1298
  %v1627 = vunpack.c.h.b16 %v1298
  %v1628 = vunpack.c.l.b16 %v1299
  %v1629 = vunpack.c.h.b16 %v1299
  %v1630 = vunpack.c.l.b16 %v1300
  %v1631 = vunpack.c.h.b16 %v1300
  %v1632 = vunpack.c.l.b16 %v1301
  %v1633 = vunpack.c.h.b16 %v1301
  %v1634 = vunpack.c.l.b16 %v1302
  %v1635 = vunpack.c.h.b16 %v1302
  %v1636 = vunpack.c.l.b16 %v1303
  %v1637 = vunpack.c.h.b16 %v1303
  %v1638 = vunpack.c.l.b16 %v1304
  %v1639 = vunpack.c.h.b16 %v1304
  %v1640 = vunpack.c.l.b16 %v1305
  %v1641 = vunpack.c.h.b16 %v1305
  %v1642 = vunpack.c.l.b16 %v1306
  %v1643 = vunpack.c.h.b16 %v1306
  %v1644 = vunpack.c.l.b16 %v1307
  %v1645 = vunpack.c.h.b16 %v1307
  %v1646 = vunpack.c.l.b16 %v1308
  %v1647 = vunpack.c.h.b16 %v1308
  %v1648 = vunpack.c.l.b16 %v1309
  %v1649 = vunpack.c.h.b16 %v1309
  %v1650 = vunpack.c.l.b16 %v1310
  %v1651 = vunpack.c.h.b16 %v1310
  %v1652 = vunpack.c.l.b16 %v1311
  %v1653 = vunpack.c.h.b16 %v1311
  %v1654 = vunpack.c.l.b16 %v1312
  %v1655 = vunpack.c.h.b16 %v1312
  %v1656 = vunpack.c.l.b16 %v1313
  %v1657 = vunpack.c.h.b16 %v1313
  %v1658 = vunpack.c.l.b16 %v1314
  %v1659 = vunpack.c.h.b16 %v1314
  %v1660 = vunpack.c.l.b16 %v1315
  %v1661 = vunpack.c.h.b16 %v1315
  %v1662 = vunpack.c.l.b16 %v1316
  %v1663 = vunpack.c.h.b16 %v1316
  %v1664 = vunpack.c.l.b16 %v1317
  %v1665 = vunpack.c.h.b16 %v1317
  %v1666 = vunpack.c.l.b16 %v1318
  %v1667 = vunpack.c.h.b16 %v1318
  %v1668 = vunpack.c.l.b16 %v1319
  %v1669 = vunpack.c.h.b16 %v1319
  %v1670 = vunpack.c.l.b16 %v1320
  %v1671 = vunpack.c.h.b16 %v1320
  %v1672 = vunpack.c.l.b16 %v1321
  %v1673 = vunpack.c.h.b16 %v1321
  %v1674 = vunpack.c.l.b16 %v1322
  %v1675 = vunpack.c.h.b16 %v1322
  %v1676 = vunpack.c.l.b16 %v1323
  %v1677 = vunpack.c.h.b16 %v1323
  %v1678 = vunpack.c.l.b16 %v1324
  %v1679 = vunpack.c.h.b16 %v1324
  %v1680 = vunpack.c.l.b16 %v1325
  %v1681 = vunpack.c.h.b16 %v1325
  %v1682 = vunpack.c.l.b16 %v1326
  %v1683 = vunpack.c.h.b16 %v1326
  %v1684 = vunpack.c.l.b16 %v1327
  %v1685 = vunpack.c.h.b16 %v1327
  %v1686 = vunpack.c.l.b16 %v1328
  %v1687 = vunpack.c.h.b16 %v1328
  %v1688 = vunpack.c.l.b16 %v1329
  %v1689 = vunpack.c.h.b16 %v1329
  %v1690 = vunpack.c.l.b16 %v1330
  %v1691 = vunpack.c.h.b16 %v1330
  %v1692 = vunpack.c.l.b16 %v1331
  %v1693 = vunpack.c.h.b16 %v1331
  %v1694 = vunpack.c.l.b16 %v1332
  %v1695 = vunpack.c.h.b16 %v1332
  %v1696 = vunpack.c.l.b16 %v1333
  %v1697 = vunpack.c.h.b16 %v1333
  %v1698 = vunpack.c.l.b16 %v1334
  %v1699 = vunpack.c.h.b16 %v1334
  %v1700 = vunpack.c.l.b16 %v1335
  %v1701 = vunpack.c.h.b16 %v1335
  %v1702 = vunpack.c.l.b16 %v1336
  %v1703 = vunpack.c.h.b16 %v1336
  %v1704 = vunpack.c.l.b16 %v1337
  %v1705 = vunpack.c.h.b16 %v1337
  %v1706 = vunpack.c.l.b16 %v1338
  %v1707 = vunpack.c.h.b16 %v1338
  %v1708 = vunpack.c.l.b16 %v1339
  %v1709 = vunpack.c.h.b16 %v1339
  %v1710 = vunpack.c.l.b16 %v1340
  %v1711 = vunpack.c.h.b16 %v1340
  %v1712 = vunpack.c.l.b16 %v1341
  %v1713 = vunpack.c.h.b16 %v1341
  %v1714 = vunpack.c.l.b16 %v1342
  %v1715 = vunpack.c.h.b16 %v1342
  %v1716 = vunpack.c.l.b16 %v1343
  %v1717 = vunpack.c.h.b16 %v1343
  %v1718 = vunpack.c.l.b16 %v1344
  %v1719 = vunpack.c.h.b16 %v1344
  %v1720 = vunpack.c.l.b16 %v1345
  %v1721 = vunpack.c.h.b16 %v1345
  %v1722 = vunpack.c.l.b16 %v1346
  %v1723 = vunpack.c.h.b16 %v1346
  %v1724 = vunpack.c.l.b16 %v1347
  %v1725 = vunpack.c.h.b16 %v1347
  %v1726 = vunpack.c.l.b16 %v1348
  %v1727 = vunpack.c.h.b16 %v1348
  %v1728 = vunpack.c.l.b16 %v1349
  %v1729 = vunpack.c.h.b16 %v1349
  %v1730 = vunpack.c.l.b16 %v1350
  %v1731 = vunpack.c.h.b16 %v1350
  %v1732 = vunpack.c.l.b16 %v1351
  %v1733 = vunpack.c.h.b16 %v1351
  %v1734 = vunpack.c.l.b16 %v1352
  %v1735 = vunpack.c.h.b16 %v1352
  %v1736 = vunpack.c.l.b16 %v1353
  %v1737 = vunpack.c.h.b16 %v1353
  %v1738 = vpack.c.b16 %v1490, %v1482
  %v1739 = vpack.c.b16 %v1491, %v1483
  %v1740 = vpack.c.b16 %v1492, %v1484
  %v1741 = vpack.c.b16 %v1493, %v1485
  %v1742 = vpack.c.b16 %v1494, %v1486
  %v1743 = vpack.c.b16 %v1495, %v1487
  %v1744 = vpack.c.b16 %v1496, %v1488
  %v1745 = vpack.c.b16 %v1497, %v1489
  %v1746 = vpack.c.b16 %v1506, %v1498
  %v1747 = vpack.c.b16 %v1507, %v1499
  %v1748 = vpack.c.b16 %v1508, %v1500
  %v1749 = vpack.c.b16 %v1509, %v1501
  %v1750 = vpack.c.b16 %v1510, %v1502
  %v1751 = vpack.c.b16 %v1511, %v1503
  %v1752 = vpack.c.b16 %v1512, %v1504
  %v1753 = vpack.c.b16 %v1513, %v1505
  %v1754 = vpack.c.b16 %v1522, %v1514
  %v1755 = vpack.c.b16 %v1523, %v1515
  %v1756 = vpack.c.b16 %v1524, %v1516
  %v1757 = vpack.c.b16 %v1525, %v1517
  %v1758 = vpack.c.b16 %v1526, %v1518
  %v1759 = vpack.c.b16 %v1527, %v1519
  %v1760 = vpack.c.b16 %v1528, %v1520
  %v1761 = vpack.c.b16 %v1529, %v1521
  %v1762 = vpack.c.b16 %v1538, %v1530
  %v1763 = vpack.c.b16 %v1539, %v1531
  %v1764 = vpack.c.b16 %v1540, %v1532
  %v1765 = vpack.c.b16 %v1541, %v1533
  %v1766 = vpack.c.b16 %v1542, %v1534
  %v1767 = vpack.c.b16 %v1543, %v1535
  %v1768 = vpack.c.b16 %v1544, %v1536
  %v1769 = vpack.c.b16 %v1545, %v1537
  %v1770 = vpack.c.b16 %v1554, %v1546
  %v1771 = vpack.c.b16 %v1555, %v1547
  %v1772 = vpack.c.b16 %v1556, %v1548
  %v1773 = vpack.c.b16 %v1557, %v1549
  %v1774 = vpack.c.b16 %v1558, %v1550
  %v1775 = vpack.c.b16 %v1559, %v1551
  %v1776 = vpack.c.b16 %v1560, %v1552
  %v1777 = vpack.c.b16 %v1561, %v1553
  %v1778 = vpack.c.b16 %v1570, %v1562
  %v1779 = vpack.c.b16 %v1571, %v1563
  %v1780 = vpack.c.b16 %v1572, %v1564
  %v1781 = vpack.c.b16 %v1573, %v1565
  %v1782 = vpack.c.b16 %v1574, %v1566
  %v1783 = vpack.c.b16 %v1575, %v1567
  %v1784 = vpack.c.b16 %v1576, %v1568
  %v1785 = vpack.c.b16 %v1577, %v1569
  %v1786 = vpack.c.b16 %v1586, %v1578
  %v1787 = vpack.c.b16 %v1587, %v1579
  %v1788 = vpack.c.b16 %v1588, %v1580
  %v1789 = vpack.c.b16 %v1589, %v1581
  %v1790 = vpack.c.b16 %v1590, %v1582
  %v1791 = vpack.c.b16 %v1591, %v1583
  %v1792 = vpack.c.b16 %v1592, %v1584
  %v1793 = vpack.c.b16 %v1593, %v1585
  %v1794 = vpack.c.b16 %v1602, %v1594
  %v1795 = vpack.c.b16 %v1603, %v1595
  %v1796 = vpack.c.b16 %v1604, %v1596
  %v1797 = vpack.c.b16 %v1605, %v1597
  %v1798 = vpack.c.b16 %v1606, %v1598
  %v1799 = vpack.c.b16 %v1607, %v1599
  %v1800 = vpack.c.b16 %v1608, %v1600
  %v1801 = vpack.c.b16 %v1609, %v1601
  %v1802 = vpack.c.b16 %v1618, %v1610
  %v1803 = vpack.c.b16 %v1619, %v1611
  %v1804 = vpack.c.b16 %v1620, %v1612
  %v1805 = vpack.c.b16 %v1621, %v1613
  %v1806 = vpack.c.b16 %v1622, %v1614
  %v1807 = vpack.c.b16 %v1623, %v1615
  %v1808 = vpack.c.b16 %v1624, %v1616
  %v1809 = vpack.c.b16 %v1625, %v1617
  %v1810 = vpack.c.b16 %v1634, %v1626
  %v1811 = vpack.c.b16 %v1635, %v1627
  %v1812 = vpack.c.b16 %v1636, %v1628
  %v1813 = vpack.c.b16 %v1637, %v1629
  %v1814 = vpack.c.b16 %v1638, %v1630
  %v1815 = vpack.c.b16 %v1639, %v1631
  %v1816 = vpack.c.b16 %v1640, %v1632
  %v1817 = vpack.c.b16 %v1641, %v1633
  %v1818 = vpack.c.b16 %v1650, %v1642
  %v1819 = vpack.c.b16 %v1651, %v1643
  %v1820 = vpack.c.b16 %v1652, %v1644
  %v1821 = vpack.c.b16 %v1653, %v1645
  %v1822 = vpack.c.b16 %v1654, %v1646
  %v1823 = vpack.c.b16 %v1655, %v1647
  %v1824 = vpack.c.b16 %v1656, %v1648
  %v1825 = vpack.c.b16 %v1657, %v1649
  %v1826 = vpack.c.b16 %v1666, %v1658
  %v1827 = vpack.c.b16 %v1667, %v1659
  %v1828 = vpack.c.b16 %v1668, %v1660
  %v1829 = vpack.c.b16 %v1669, %v1661
  %v1830 = vpack.c.b16 %v1670, %v1662
  %v1831 = vpack.c.b16 %v1671, %v1663
  %v1832 = vpack.c.b16 %v1672, %v1664
  %v1833 = vpack.c.b16 %v1673, %v1665
  %v1834 = vpack.c.b16 %v1682, %v1674
  %v1835 = vpack.c.b16 %v1683, %v1675
  %v1836 = vpack.c.b16 %v1684, %v1676
  %v1837 = vpack.c.b16 %v1685, %v1677
  %v1838 = vpack.c.b16 %v1686, %v1678
  %v1839 = vpack.c.b16 %v1687, %v1679
  %v1840 = vpack.c.b16 %v1688, %v1680
  %v1841 = vpack.c.b16 %v1689, %v1681
  %v1842 = vpack.c.b16 %v1698, %v1690
  %v1843 = vpack.c.b16 %v1699, %v1691
  %v1844 = vpack.c.b16 %v1700, %v1692
  %v1845 = vpack.c.b16 %v1701, %v1693
  %v1846 = vpack.c.b16 %v1702, %v1694
  %v1847 = vpack.c.b16 %v1703, %v1695
  %v1848 = vpack.c.b16 %v1704, %v1696
  %v1849 = vpack.c.b16 %v1705, %v1697
  %v1850 = vpack.c.b16 %v1714, %v1706
  %v1851 = vpack.c.b16 %v1715, %v1707
  %v1852 = vpack.c.b16 %v1716, %v1708
  %v1853 = vpack.c.b16 %v1717, %v1709
  %v1854 = vpack.c.b16 %v1718, %v1710
  %v1855 = vpack.c.b16 %v1719, %v1711
  %v1856 = vpack.c.b16 %v1720, %v1712
  %v1857 = vpack.c.b16 %v1721, %v1713
  %v1858 = vpack.c.b16 %v1730, %v1722
  %v1859 = vpack.c.b16 %v1731, %v1723
  %v1860 = vpack.c.b16 %v1732, %v1724
  %v1861 = vpack.c.b16 %v1733, %v1725
  %v1862 = vpack.c.b16 %v1734, %v1726
  %v1863 = vpack.c.b16 %v1735, %v1727
  %v1864 = vpack.c.b16 %v1736, %v1728
  %v1865 = vpack.c.b16 %v1737, %v1729
  %1994 = vmatprep.subr.bf16.mxu0 %v1739
  %1995 = vmatpush1.bf16.msra.mxu0 %v1738
  %1996 = vmatprep.subr.bf16.mxu0 %v1747
  %1997 = vmatpush1.bf16.msra.mxu0 %v1746
  %1998 = vmatprep.subr.bf16.mxu0 %v1755
  %1999 = vmatpush1.bf16.msra.mxu0 %v1754
  %2000 = vmatprep.subr.bf16.mxu0 %v1763
  %2001 = vmatpush1.bf16.msra.mxu0 %v1762
  %2002 = vmatprep.subr.bf16.mxu0 %v1771
  %2003 = vmatpush1.bf16.msra.mxu0 %v1770
  %2004 = vmatprep.subr.bf16.mxu0 %v1779
  %2005 = vmatpush1.bf16.msra.mxu0 %v1778
  %2006 = vmatprep.subr.bf16.mxu0 %v1787
  %2007 = vmatpush1.bf16.msra.mxu0 %v1786
  %2008 = vmatprep.subr.bf16.mxu0 %v1795
  %2009 = vmatpush1.bf16.msra.mxu0 %v1794
  %2010 = vmatprep.subr.bf16.mxu0 %v1803
  %2011 = vmatpush1.bf16.msra.mxu0 %v1802
  %2012 = vmatprep.subr.bf16.mxu0 %v1811
  %2013 = vmatpush1.bf16.msra.mxu0 %v1810
  %2014 = vmatprep.subr.bf16.mxu0 %v1819
  %2015 = vmatpush1.bf16.msra.mxu0 %v1818
  %2016 = vmatprep.subr.bf16.mxu0 %v1827
  %2017 = vmatpush1.bf16.msra.mxu0 %v1826
  %2018 = vmatprep.subr.bf16.mxu0 %v1835
  %2019 = vmatpush1.bf16.msra.mxu0 %v1834
  %2020 = vmatprep.subr.bf16.mxu0 %v1843
  %2021 = vmatpush1.bf16.msra.mxu0 %v1842
  %2022 = vmatprep.subr.bf16.mxu0 %v1851
  %2023 = vmatpush1.bf16.msra.mxu0 %v1850
  %2024 = vmatprep.subr.bf16.mxu0 %v1859
  %2025 = vmatpush1.bf16.msra.mxu0 %v1858
  %2026 = vmatprep.mubr.bf16.mxu0 %v1221
  %2027 = vmatmul.mubr.bf16.gmra.mrb[0].mxu0 %v1220
  %v2028 = vpop.f32.mrb[0].mxu0
  %v2029 = vadd.f32 0.0, %v2028
  %v2030 = vpop.f32.mrb[0].mxu0
  %v2031 = vadd.f32 0.0, %v2030
  %v2032 = vpop.f32.mrb[0].mxu0
  %v2033 = vadd.f32 0.0, %v2032
  %v2034 = vpop.f32.mrb[0].mxu0
  %v2035 = vadd.f32 0.0, %v2034
  %2036 = vmatprep.mubr.bf16.mxu0 %v1223
  %2037 = vmatmul.mubr.bf16.gmra.mrb[0].mxu0 %v1222
  %v2038 = vpop.f32.mrb[0].mxu0
  %v2039 = vadd.f32 0.0, %v2038
  %v2040 = vpop.f32.mrb[0].mxu0
  %v2041 = vadd.f32 0.0, %v2040
  %v2042 = vpop.f32.mrb[0].mxu0
  %v2043 = vadd.f32 0.0, %v2042
  %v2044 = vpop.f32.mrb[0].mxu0
  %v2045 = vadd.f32 0.0, %v2044
  %2046 = vmatprep.mubr.bf16.mxu0 %v1225
  %2047 = vmatmul.mubr.bf16.gmra.mrb[0].mxu0 %v1224
  %v2048 = vpop.f32.mrb[0].mxu0
  %v2049 = vadd.f32 0.0, %v2048
  %v2050 = vpop.f32.mrb[0].mxu0
  %v2051 = vadd.f32 0.0, %v2050
  %v2052 = vpop.f32.mrb[0].mxu0
  %v2053 = vadd.f32 0.0, %v2052
  %v2054 = vpop.f32.mrb[0].mxu0
  %v2055 = vadd.f32 0.0, %v2054
  %2056 = vdwg.mxu0
  %2057 = vmatprep.subr.bf16.mxu0 %v1741
  %2058 = vmatpush1.bf16.msra.mxu0 %v1740
  %2059 = vmatprep.subr.bf16.mxu0 %v1749
  %2060 = vmatpush1.bf16.msra.mxu0 %v1748
  %2061 = vmatprep.subr.bf16.mxu0 %v1757
  %2062 = vmatpush1.bf16.msra.mxu0 %v1756
  %2063 = vmatprep.subr.bf16.mxu0 %v1765
  %2064 = vmatpush1.bf16.msra.mxu0 %v1764
  %2065 = vmatprep.subr.bf16.mxu0 %v1773
  %2066 = vmatpush1.bf16.msra.mxu0 %v1772
  %2067 = vmatprep.subr.bf16.mxu0 %v1781
  %2068 = vmatpush1.bf16.msra.mxu0 %v1780
  %2069 = vmatprep.subr.bf16.mxu0 %v1789
  %2070 = vmatpush1.bf16.msra.mxu0 %v1788
  %2071 = vmatprep.subr.bf16.mxu0 %v1797
  %2072 = vmatpush1.bf16.msra.mxu0 %v1796
  %2073 = vmatprep.subr.bf16.mxu0 %v1805
  %2074 = vmatpush1.bf16.msra.mxu0 %v1804
  %2075 = vmatprep.subr.bf16.mxu0 %v1813
  %2076 = vmatpush1.bf16.msra.mxu0 %v1812
  %2077 = vmatprep.subr.bf16.mxu0 %v1821
  %2078 = vmatpush1.bf16.msra.mxu0 %v1820
  %2079 = vmatprep.subr.bf16.mxu0 %v1829
  %2080 = vmatpush1.bf16.msra.mxu0 %v1828
  %2081 = vmatprep.subr.bf16.mxu0 %v1837
  %2082 = vmatpush1.bf16.msra.mxu0 %v1836
  %2083 = vmatprep.subr.bf16.mxu0 %v1845
  %2084 = vmatpush1.bf16.msra.mxu0 %v1844
  %2085 = vmatprep.subr.bf16.mxu0 %v1853
  %2086 = vmatpush1.bf16.msra.mxu0 %v1852
  %2087 = vmatprep.subr.bf16.mxu0 %v1861
  %2088 = vmatpush1.bf16.msra.mxu0 %v1860
  %2089 = vmatprep.mubr.bf16.mxu0 %v1221
  %2090 = vmatmul.mubr.bf16.gmra.mrb[0].mxu0 %v1220
  %v2091 = vpop.f32.mrb[0].mxu0
  %v2092 = vadd.f32 0.0, %v2091
  %v2093 = vpop.f32.mrb[0].mxu0
  %v2094 = vadd.f32 0.0, %v2093
  %v2095 = vpop.f32.mrb[0].mxu0
  %v2096 = vadd.f32 0.0, %v2095
  %v2097 = vpop.f32.mrb[0].mxu0
  %v2098 = vadd.f32 0.0, %v2097
  %2099 = vmatprep.mubr.bf16.mxu0 %v1223
  %2100 = vmatmul.mubr.bf16.gmra.mrb[0].mxu0 %v1222
  %v2101 = vpop.f32.mrb[0].mxu0
  %v2102 = vadd.f32 0.0, %v2101
  %v2103 = vpop.f32.mrb[0].mxu0
  %v2104 = vadd.f32 0.0, %v2103
  %v2105 = vpop.f32.mrb[0].mxu0
  %v2106 = vadd.f32 0.0, %v2105
  %v2107 = vpop.f32.mrb[0].mxu0
  %v2108 = vadd.f32 0.0, %v2107
  %2109 = vmatprep.mubr.bf16.mxu0 %v1225
  %2110 = vmatmul.mubr.bf16.gmra.mrb[0].mxu0 %v1224
  %v2111 = vpop.f32.mrb[0].mxu0
  %v2112 = vadd.f32 0.0, %v2111
  %v2113 = vpop.f32.mrb[0].mxu0
  %v2114 = vadd.f32 0.0, %v2113
  %v2115 = vpop.f32.mrb[0].mxu0
  %v2116 = vadd.f32 0.0, %v2115
  %v2117 = vpop.f32.mrb[0].mxu0
  %v2118 = vadd.f32 0.0, %v2117
  %2119 = vdwg.mxu0
  %2120 = vmatprep.subr.bf16.mxu0 %v1743
  %2121 = vmatpush1.bf16.msra.mxu0 %v1742
  %2122 = vmatprep.subr.bf16.mxu0 %v1751
  %2123 = vmatpush1.bf16.msra.mxu0 %v1750
  %2124 = vmatprep.subr.bf16.mxu0 %v1759
  %2125 = vmatpush1.bf16.msra.mxu0 %v1758
  %2126 = vmatprep.subr.bf16.mxu0 %v1767
  %2127 = vmatpush1.bf16.msra.mxu0 %v1766
  %2128 = vmatprep.subr.bf16.mxu0 %v1775
  %2129 = vmatpush1.bf16.msra.mxu0 %v1774
  %2130 = vmatprep.subr.bf16.mxu0 %v1783
  %2131 = vmatpush1.bf16.msra.mxu0 %v1782
  %2132 = vmatprep.subr.bf16.mxu0 %v1791
  %2133 = vmatpush1.bf16.msra.mxu0 %v1790
  %2134 = vmatprep.subr.bf16.mxu0 %v1799
  %2135 = vmatpush1.bf16.msra.mxu0 %v1798
  %2136 = vmatprep.subr.bf16.mxu0 %v1807
  %2137 = vmatpush1.bf16.msra.mxu0 %v1806
  %2138 = vmatprep.subr.bf16.mxu0 %v1815
  %2139 = vmatpush1.bf16.msra.mxu0 %v1814
  %2140 = vmatprep.subr.bf16.mxu0 %v1823
  %2141 = vmatpush1.bf16.msra.mxu0 %v1822
  %2142 = vmatprep.subr.bf16.mxu0 %v1831
  %2143 = vmatpush1.bf16.msra.mxu0 %v1830
  %2144 = vmatprep.subr.bf16.mxu0 %v1839
  %2145 = vmatpush1.bf16.msra.mxu0 %v1838
  %2146 = vmatprep.subr.bf16.mxu0 %v1847
  %2147 = vmatpush1.bf16.msra.mxu0 %v1846
  %2148 = vmatprep.subr.bf16.mxu0 %v1855
  %2149 = vmatpush1.bf16.msra.mxu0 %v1854
  %2150 = vmatprep.subr.bf16.mxu0 %v1863
  %2151 = vmatpush1.bf16.msra.mxu0 %v1862
  %2152 = vmatprep.mubr.bf16.mxu0 %v1221
  %2153 = vmatmul.mubr.bf16.gmra.mrb[0].mxu0 %v1220
  %v2154 = vpop.f32.mrb[0].mxu0
  %v2155 = vadd.f32 0.0, %v2154
  %v2156 = vpop.f32.mrb[0].mxu0
  %v2157 = vadd.f32 0.0, %v2156
  %v2158 = vpop.f32.mrb[0].mxu0
  %v2159 = vadd.f32 0.0, %v2158
  %v2160 = vpop.f32.mrb[0].mxu0
  %v2161 = vadd.f32 0.0, %v2160
  %2162 = vmatprep.mubr.bf16.mxu0 %v1223
  %2163 = vmatmul.mubr.bf16.gmra.mrb[0].mxu0 %v1222
  %v2164 = vpop.f32.mrb[0].mxu0
  %v2165 = vadd.f32 0.0, %v2164
  %v2166 = vpop.f32.mrb[0].mxu0
  %v2167 = vadd.f32 0.0, %v2166
  %v2168 = vpop.f32.mrb[0].mxu0
  %v2169 = vadd.f32 0.0, %v2168
  %v2170 = vpop.f32.mrb[0].mxu0
  %v2171 = vadd.f32 0.0, %v2170
  %2172 = vmatprep.mubr.bf16.mxu0 %v1225
  %2173 = vmatmul.mubr.bf16.gmra.mrb[0].mxu0 %v1224
  %v2174 = vpop.f32.mrb[0].mxu0
  %v2175 = vadd.f32 0.0, %v2174
  %v2176 = vpop.f32.mrb[0].mxu0
  %v2177 = vadd.f32 0.0, %v2176
  %v2178 = vpop.f32.mrb[0].mxu0
  %v2179 = vadd.f32 0.0, %v2178
  %v2180 = vpop.f32.mrb[0].mxu0
  %v2181 = vadd.f32 0.0, %v2180
  %2182 = vdwg.mxu0
  %2183 = vmatprep.subr.bf16.mxu0 %v1745
  %2184 = vmatpush1.bf16.msra.mxu0 %v1744
  %2185 = vmatprep.subr.bf16.mxu0 %v1753
  %2186 = vmatpush1.bf16.msra.mxu0 %v1752
  %2187 = vmatprep.subr.bf16.mxu0 %v1761
  %2188 = vmatpush1.bf16.msra.mxu0 %v1760
  %2189 = vmatprep.subr.bf16.mxu0 %v1769
  %2190 = vmatpush1.bf16.msra.mxu0 %v1768
  %2191 = vmatprep.subr.bf16.mxu0 %v1777
  %2192 = vmatpush1.bf16.msra.mxu0 %v1776
  %2193 = vmatprep.subr.bf16.mxu0 %v1785
  %2194 = vmatpush1.bf16.msra.mxu0 %v1784
  %2195 = vmatprep.subr.bf16.mxu0 %v1793
  %2196 = vmatpush1.bf16.msra.mxu0 %v1792
  %2197 = vmatprep.subr.bf16.mxu0 %v1801
  %2198 = vmatpush1.bf16.msra.mxu0 %v1800
  %2199 = vmatprep.subr.bf16.mxu0 %v1809
  %2200 = vmatpush1.bf16.msra.mxu0 %v1808
  %2201 = vmatprep.subr.bf16.mxu0 %v1817
  %2202 = vmatpush1.bf16.msra.mxu0 %v1816
  %2203 = vmatprep.subr.bf16.mxu0 %v1825
  %2204 = vmatpush1.bf16.msra.mxu0 %v1824
  %2205 = vmatprep.subr.bf16.mxu0 %v1833
  %2206 = vmatpush1.bf16.msra.mxu0 %v1832
  %2207 = vmatprep.subr.bf16.mxu0 %v1841
  %2208 = vmatpush1.bf16.msra.mxu0 %v1840
  %2209 = vmatprep.subr.bf16.mxu0 %v1849
  %2210 = vmatpush1.bf16.msra.mxu0 %v1848
  %2211 = vmatprep.subr.bf16.mxu0 %v1857
  %2212 = vmatpush1.bf16.msra.mxu0 %v1856
  %2213 = vmatprep.subr.bf16.mxu0 %v1865
  %2214 = vmatpush1.bf16.msra.mxu0 %v1864
  %2215 = vmatprep.mubr.bf16.mxu0 %v1221
  %2216 = vmatmul.mubr.bf16.gmra.mrb[0].mxu0 %v1220
  %v2217 = vpop.f32.mrb[0].mxu0
  %v2218 = vadd.f32 0.0, %v2217
  %v2219 = vpop.f32.mrb[0].mxu0
  %v2220 = vadd.f32 0.0, %v2219
  %v2221 = vpop.f32.mrb[0].mxu0
  %v2222 = vadd.f32 0.0, %v2221
  %v2223 = vpop.f32.mrb[0].mxu0
  %v2224 = vadd.f32 0.0, %v2223
  %2225 = vmatprep.mubr.bf16.mxu0 %v1223
  %2226 = vmatmul.mubr.bf16.gmra.mrb[0].mxu0 %v1222
  %v2227 = vpop.f32.mrb[0].mxu0
  %v2228 = vadd.f32 0.0, %v2227
  %v2229 = vpop.f32.mrb[0].mxu0
  %v2230 = vadd.f32 0.0, %v2229
  %v2231 = vpop.f32.mrb[0].mxu0
  %v2232 = vadd.f32 0.0, %v2231
  %v2233 = vpop.f32.mrb[0].mxu0
  %v2234 = vadd.f32 0.0, %v2233
  %2235 = vmatprep.mubr.bf16.mxu0 %v1225
  %2236 = vmatmul.mubr.bf16.gmra.mrb[0].mxu0 %v1224
  %v2237 = vpop.f32.mrb[0].mxu0
  %v2238 = vadd.f32 0.0, %v2237
  %v2239 = vpop.f32.mrb[0].mxu0
  %v2240 = vadd.f32 0.0, %v2239
  %v2241 = vpop.f32.mrb[0].mxu0
  %v2242 = vadd.f32 0.0, %v2241
  %v2243 = vpop.f32.mrb[0].mxu0
  %v2244 = vadd.f32 0.0, %v2243
  %2245 = vdwg.mxu0
  %2246 = vst [vmem:[%s4] sm:$0xff] %v2029
  %2247 = vst [vmem:[%s4 + $0x8] sm:$0xff] %v2031
  %2248 = vst [vmem:[%s4 + $0x10] sm:$0xff] %v2092
  %2249 = vst [vmem:[%s4 + $0x18] sm:$0xff] %v2094
  %2250 = vst [vmem:[%s4 + $0x20] sm:$0xff] %v2155
  %2251 = vst [vmem:[%s4 + $0x28] sm:$0xff] %v2157
  %2252 = vst [vmem:[%s4 + $0x30] sm:$0xff] %v2218
  %2253 = vst [vmem:[%s4 + $0x38] sm:$0xff] %v2220
  %2254 = vst [vmem:[%s4 + $0x40] sm:$0xff] %v2033
  %2255 = vst [vmem:[%s4 + $0x48] sm:$0xff] %v2035
  %2256 = vst [vmem:[%s4 + $0x50] sm:$0xff] %v2096
  %2257 = vst [vmem:[%s4 + $0x58] sm:$0xff] %v2098
  %2258 = vst [vmem:[%s4 + $0x60] sm:$0xff] %v2159
  %2259 = vst [vmem:[%s4 + $0x68] sm:$0xff] %v2161
  %2260 = vst [vmem:[%s4 + $0x70] sm:$0xff] %v2222
  %2261 = vst [vmem:[%s4 + $0x78] sm:$0xff] %v2224
  %2262 = vst [vmem:[%s4 + $0x80] sm:$0xff] %v2039
  %2263 = vst [vmem:[%s4 + $0x88] sm:$0xff] %v2041
  %2264 = vst [vmem:[%s4 + $0x90] sm:$0xff] %v2102
  %2265 = vst [vmem:[%s4 + $0x98] sm:$0xff] %v2104
  %2266 = vst [vmem:[%s4 + $0xa0] sm:$0xff] %v2165
  %2267 = vst [vmem:[%s4 + $0xa8] sm:$0xff] %v2167
  %2268 = vst [vmem:[%s4 + $0xb0] sm:$0xff] %v2228
  %2269 = vst [vmem:[%s4 + $0xb8] sm:$0xff] %v2230
  %2270 = vst [vmem:[%s4 + $0xc0] sm:$0xff] %v2043
  %2271 = vst [vmem:[%s4 + $0xc8] sm:$0xff] %v2045
  %2272 = vst [vmem:[%s4 + $0xd0] sm:$0xff] %v2106
  %2273 = vst [vmem:[%s4 + $0xd8] sm:$0xff] %v2108
  %2274 = vst [vmem:[%s4 + $0xe0] sm:$0xff] %v2169
  %2275 = vst [vmem:[%s4 + $0xe8] sm:$0xff] %v2171
  %2276 = vst [vmem:[%s4 + $0xf0] sm:$0xff] %v2232
  %2277 = vst [vmem:[%s4 + $0xf8] sm:$0xff] %v2234
  %2278 = vst [vmem:[%s4 + $0x100] sm:$0xff] %v2049
  %2279 = vst [vmem:[%s4 + $0x108] sm:$0xff] %v2051
  %2280 = vst [vmem:[%s4 + $0x110] sm:$0xff] %v2112
  %2281 = vst [vmem:[%s4 + $0x118] sm:$0xff] %v2114
  %2282 = vst [vmem:[%s4 + $0x120] sm:$0xff] %v2175
  %2283 = vst [vmem:[%s4 + $0x128] sm:$0xff] %v2177
  %2284 = vst [vmem:[%s4 + $0x130] sm:$0xff] %v2238
  %2285 = vst [vmem:[%s4 + $0x138] sm:$0xff] %v2240
  %2286 = vst [vmem:[%s4 + $0x140] sm:$0xff] %v2053
  %2287 = vst [vmem:[%s4 + $0x148] sm:$0xff] %v2055
  %2288 = vst [vmem:[%s4 + $0x150] sm:$0xff] %v2116
  %2289 = vst [vmem:[%s4 + $0x158] sm:$0xff] %v2118
  %2290 = vst [vmem:[%s4 + $0x160] sm:$0xff] %v2179
  %2291 = vst [vmem:[%s4 + $0x168] sm:$0xff] %v2181
  %2292 = vst [vmem:[%s4 + $0x170] sm:$0xff] %v2242
  %2293 = vst [vmem:[%s4 + $0x178] sm:$0xff] %v2244
  // Predicated region
  $region18: #{fwd.1} parent=0 // pred_check
    _
  $region19: #{fwd.1} parent=0 // pred_check_branch
    %2295 = sbr.rel (0) target = $region21
  $region20: #{fwd.1} parent=0 // pred_region
    _
  $region21: #{fwd.1} parent=0 // pred_fallthru
    _
  // Predicated region
  $region22: #{fwd.1} parent=0 // pred_check
    _
  $region23: #{fwd.1} parent=0 // pred_check_branch
    %2297 = sbr.rel (0) target = $region25
  $region24: #{fwd.1} parent=0 // pred_region
    _
  $region25: #{fwd.1} parent=0 // pred_fallthru
    _

</llo_original>
